<compile_context>
chip_gen: v7x
topology: tpu7x:2x2x1
jax: 0.10.0
libtpu: 0.0.40
codegen_flags: <defaults>
</compile_context>

<pallas_src>
import jax
import jax.numpy as jnp
from jax.experimental import pallas as pl
from jax.experimental.pallas import tpu as pltpu


NEG_SLOPE = 0.2


def _leaky_relu(h):
    return jnp.where(h >= 0, h, NEG_SLOPE * h)


def stack_disc_kernel(x_ref,
                      w1_ref, b1_ref,
                      w2_ref, b2_ref,
                      w3_ref, b3_ref,
                      w4_ref, b4_ref,
                      w5_ref, b5_ref,
                      logits_ref, disc_ref):
    # Transposed layout: x_ref (Cin, T); weights (Cout, Cin); biases (Cout, 1).
    x = x_ref[...].astype(jnp.float32)                     # (Cin, T)
    w1 = w1_ref[...]                                       # (64, Cin) f32
    cin = x.shape[0]

    # --- layer 1: K = Cin (tiny) -> VPU broadcast-FMAs, keep off the MXU.
    h = w1[:, 0:1] * x[0:1, :]                             # (64, T)
    for c in range(1, cin):
        h = h + w1[:, c:c + 1] * x[c:c + 1, :]
    h = _leaky_relu(h + b1_ref[...])

    # --- layers 2-4: bf16 MXU matmuls (weights pre-cast in wrapper), f32 acc.
    for w_ref, b_ref in ((w2_ref, b2_ref), (w3_ref, b3_ref), (w4_ref, b4_ref)):
        h = jnp.dot(w_ref[...], h.astype(jnp.bfloat16),
                    preferred_element_type=jnp.float32) + b_ref[...]
        h = _leaky_relu(h)                                 # (Cout, T)

    # torch.max over channels (sublane reduction).
    m = jnp.max(h, axis=0, keepdims=True)                  # (1, T)

    # conv5: Conv1d(1, num_shapes, 1)  ==  outer-product broadcast.
    logits = m * w5_ref[...] + b5_ref[...]                 # (S, T)
    logits_ref[...] = logits

    # custom_activation: logsumexp over shapes, then out / (out + 1).
    lmax = jnp.max(logits, axis=0, keepdims=True)          # (1, T)
    lse = lmax + jnp.log(jnp.sum(jnp.exp(logits - lmax), axis=0, keepdims=True))
    disc_ref[...] = lse * pl.reciprocal(lse + 1.0, approx=True)


def stack_disc_net(x_ncl, params, *, tile_n=2048):
    """x_ncl: (B, input_dim, N) float32.  Returns (shape_logits, disc_out)."""
    B, Cin, N = x_ncl.shape
    (w1, b1, w2, b2, w3, b3, w4, b4, w5, b5) = params
    S = w5.shape[0]  # num_shapes

    # Lane-tile selection: full extent when N is small (any N allowed), else a
    # 128-multiple tile with zero padding so the grid divides evenly.
    if N <= tile_n:
        tile = N
        n_pad = N
    else:
        tile = max(128, (tile_n // 128) * 128)
        n_pad = pl.cdiv(N, tile) * tile
        if n_pad != N:
            x_ncl = jnp.pad(x_ncl, ((0, 0), (0, 0), (0, n_pad - N)))
    grid = (B, n_pad // tile)

    # bf16 operands for the three big matmuls (f32 accumulate in-kernel).
    w2b = w2.astype(jnp.bfloat16)
    w3b = w3.astype(jnp.bfloat16)
    w4b = w4.astype(jnp.bfloat16)

    def full(a):
        return pl.BlockSpec(a.shape, lambda b, j: (0,) * a.ndim)

    logits_pad, disc_pad = pl.pallas_call(
        stack_disc_kernel,
        out_shape=(
            jax.ShapeDtypeStruct((B, S, n_pad), jnp.float32),
            jax.ShapeDtypeStruct((B, 1, n_pad), jnp.float32),
        ),
        grid_spec=pltpu.PrefetchScalarGridSpec(
            num_scalar_prefetch=0,
            grid=grid,
            in_specs=[
                pl.BlockSpec((None, Cin, tile), lambda b, j: (b, 0, j)),
                full(w1), full(b1),
                full(w2b), full(b2),
                full(w3b), full(b3),
                full(w4b), full(b4),
                full(w5), full(b5),
            ],
            out_specs=[
                pl.BlockSpec((None, S, tile), lambda b, j: (b, 0, j)),
                pl.BlockSpec((None, 1, tile), lambda b, j: (b, 0, j)),
            ],
        ),
        compiler_params=pltpu.CompilerParams(
            dimension_semantics=("parallel", "parallel")),
    )(x_ncl, w1, b1, w2b, b2, w3b, b3, w4b, b4, w5, b5)

    # Outputs already lane-dense and in the right channel-major layout.
    shape_logits = logits_pad[:, :, :N]                       # (B, S, N)
    disc_out = disc_pad[:, :, :N].reshape(B, N, 1)            # (B, 1, N)->(B, N, 1), free
    return shape_logits, disc_out


def init_params(key, input_dim, num_shapes):
    """Synthetic weights in PyTorch Conv1d(k=1) layout: W (Cout, Cin), b (Cout, 1)."""
    dims = [(input_dim, 64), (64, 64), (64, 64), (64, 128), (1, num_shapes)]
    params = []
    for (ci, co) in dims:
        key, kw, kb = jax.random.split(key, 3)
        bound = 1.0 / jnp.sqrt(float(ci))  # PyTorch default uniform bound
        w = jax.random.uniform(kw, (co, ci), jnp.float32, -bound, bound)
        b = jax.random.uniform(kb, (co, 1), jnp.float32, -bound, bound)
        params += [w, b]
    return tuple(params)


def _reference(x_ncl, params):
    """Pure-JAX reference mirroring the kernel's bf16 matmul precision."""
    (w1, b1, w2, b2, w3, b3, w4, b4, w5, b5) = params
    h = jnp.transpose(x_ncl, (0, 2, 1))                       # (B, N, Cin)
    h = _leaky_relu(h @ w1.T + b1[:, 0])
    for (w, b) in [(w2, b2), (w3, b3), (w4, b4)]:
        h = _leaky_relu(
            jnp.dot(h.astype(jnp.bfloat16), w.astype(jnp.bfloat16).T,
                    preferred_element_type=jnp.float32) + b[:, 0])
    m = jnp.max(h, axis=-1, keepdims=True)                    # (B, N, 1)
    logits = m * w5[:, 0] + b5[:, 0]                          # (B, N, S)
    lse = jax.scipy.special.logsumexp(logits, axis=-1, keepdims=True)
    disc = lse / (lse + 1.0)
    return logits.transpose(0, 2, 1), disc                    # (B, S, N), (B, N, 1)


if __name__ == "__main__":
    B, input_dim, input_pts, num_shapes = 2, 4, 16, 8

    key = jax.random.PRNGKey(0)
    k_x, k_p = jax.random.split(key)
    x = jax.random.normal(k_x, (B, input_dim, input_pts), jnp.float32)
    params = init_params(k_p, input_dim, num_shapes)

    shape_logits, disc_out = jax.jit(stack_disc_net)(x, params)
    jax.block_until_ready((shape_logits, disc_out))

    ref_logits, ref_disc = _reference(x, params)
    assert shape_logits.shape == (B, num_shapes, input_pts)
    assert disc_out.shape == (B, input_pts, 1)
    # bf16 MXU + approx reciprocal -> loosened tolerance vs the f32 reference.
    assert jnp.allclose(shape_logits, ref_logits, atol=2e-2, rtol=2e-2)
    assert jnp.allclose(disc_out, ref_disc, atol=2e-2, rtol=2e-2)

    print("KERNEL_OK")
</pallas_src>

<mosaic_0001>
module attributes {stable_mosaic.version = 11 : i64} {
  func.func @stack_disc_kernel(%arg0: i32, %arg1: i32, %arg2: memref<1x4x16xf32, #tpu.memory_space<vmem>>, %arg3: memref<64x4xf32, #tpu.memory_space<vmem>>, %arg4: memref<64x1xf32, #tpu.memory_space<vmem>>, %arg5: memref<64x64xbf16, #tpu.memory_space<vmem>>, %arg6: memref<64x1xf32, #tpu.memory_space<vmem>>, %arg7: memref<64x64xbf16, #tpu.memory_space<vmem>>, %arg8: memref<64x1xf32, #tpu.memory_space<vmem>>, %arg9: memref<128x64xbf16, #tpu.memory_space<vmem>>, %arg10: memref<128x1xf32, #tpu.memory_space<vmem>>, %arg11: memref<8x1xf32, #tpu.memory_space<vmem>>, %arg12: memref<8x1xf32, #tpu.memory_space<vmem>>, %arg13: memref<1x8x16xf32, #tpu.memory_space<vmem>>, %arg14: memref<1x1x16xf32, #tpu.memory_space<vmem>>) attributes {dimension_semantics = [#tpu.dimension_semantics<parallel>, #tpu.dimension_semantics<parallel>], iteration_bounds = array<i64: 2, 1>, scalar_prefetch = 0 : i64, scratch_operands = 0 : i64, tpu.core_type = #tpu.core_type<tc>, window_params = [{transform_indices = @transform_0, window_bounds = array<i64: 1, 4, 16>}, {pipeline_mode = #tpu.pipeline_mode<synchronous>, transform_indices = @transform_1, window_bounds = array<i64: 64, 4>}, {pipeline_mode = #tpu.pipeline_mode<synchronous>, transform_indices = @transform_2, window_bounds = array<i64: 64, 1>}, {pipeline_mode = #tpu.pipeline_mode<synchronous>, transform_indices = @transform_3, window_bounds = array<i64: 64, 64>}, {pipeline_mode = #tpu.pipeline_mode<synchronous>, transform_indices = @transform_4, window_bounds = array<i64: 64, 1>}, {pipeline_mode = #tpu.pipeline_mode<synchronous>, transform_indices = @transform_5, window_bounds = array<i64: 64, 64>}, {pipeline_mode = #tpu.pipeline_mode<synchronous>, transform_indices = @transform_6, window_bounds = array<i64: 64, 1>}, {pipeline_mode = #tpu.pipeline_mode<synchronous>, transform_indices = @transform_7, window_bounds = array<i64: 128, 64>}, {pipeline_mode = #tpu.pipeline_mode<synchronous>, transform_indices = @transform_8, window_bounds = array<i64: 128, 1>}, {pipeline_mode = #tpu.pipeline_mode<synchronous>, transform_indices = @transform_9, window_bounds = array<i64: 8, 1>}, {pipeline_mode = #tpu.pipeline_mode<synchronous>, transform_indices = @transform_10, window_bounds = array<i64: 8, 1>}, {transform_indices = @transform_11, window_bounds = array<i64: 1, 8, 16>}, {transform_indices = @transform_12, window_bounds = array<i64: 1, 1, 16>}]} {
    %c0 = arith.constant 0 : index
    %c0_0 = arith.constant 0 : index
    %c0_1 = arith.constant 0 : index
    %0 = vector.load %arg2[%c0, %c0_0, %c0_1] : memref<1x4x16xf32, #tpu.memory_space<vmem>>, vector<1x4x16xf32>
    %1 = vector.shape_cast %0 : vector<1x4x16xf32> to vector<4x16xf32>
    %c0_2 = arith.constant 0 : index
    %c0_3 = arith.constant 0 : index
    %2 = vector.load %arg3[%c0_2, %c0_3] : memref<64x4xf32, #tpu.memory_space<vmem>>, vector<64x4xf32>
    %3 = vector.extract_strided_slice %2 {offsets = [0, 0], sizes = [64, 1], strides = [1, 1]} : vector<64x4xf32> to vector<64x1xf32>
    %4 = vector.extract_strided_slice %1 {offsets = [0, 0], sizes = [1, 16], strides = [1, 1]} : vector<4x16xf32> to vector<1x16xf32>
    %5 = vector.broadcast %3 : vector<64x1xf32> to vector<64x16xf32>
    %6 = vector.broadcast %4 : vector<1x16xf32> to vector<64x16xf32>
    %7 = arith.mulf %5, %6 : vector<64x16xf32>
    %8 = vector.extract_strided_slice %2 {offsets = [0, 1], sizes = [64, 1], strides = [1, 1]} : vector<64x4xf32> to vector<64x1xf32>
    %9 = vector.extract_strided_slice %1 {offsets = [1, 0], sizes = [1, 16], strides = [1, 1]} : vector<4x16xf32> to vector<1x16xf32>
    %10 = vector.broadcast %8 : vector<64x1xf32> to vector<64x16xf32>
    %11 = vector.broadcast %9 : vector<1x16xf32> to vector<64x16xf32>
    %12 = arith.mulf %10, %11 : vector<64x16xf32>
    %13 = arith.addf %7, %12 : vector<64x16xf32>
    %14 = vector.extract_strided_slice %2 {offsets = [0, 2], sizes = [64, 1], strides = [1, 1]} : vector<64x4xf32> to vector<64x1xf32>
    %15 = vector.extract_strided_slice %1 {offsets = [2, 0], sizes = [1, 16], strides = [1, 1]} : vector<4x16xf32> to vector<1x16xf32>
    %16 = vector.broadcast %14 : vector<64x1xf32> to vector<64x16xf32>
    %17 = vector.broadcast %15 : vector<1x16xf32> to vector<64x16xf32>
    %18 = arith.mulf %16, %17 : vector<64x16xf32>
    %19 = arith.addf %13, %18 : vector<64x16xf32>
    %20 = vector.extract_strided_slice %2 {offsets = [0, 3], sizes = [64, 1], strides = [1, 1]} : vector<64x4xf32> to vector<64x1xf32>
    %21 = vector.extract_strided_slice %1 {offsets = [3, 0], sizes = [1, 16], strides = [1, 1]} : vector<4x16xf32> to vector<1x16xf32>
    %22 = vector.broadcast %20 : vector<64x1xf32> to vector<64x16xf32>
    %23 = vector.broadcast %21 : vector<1x16xf32> to vector<64x16xf32>
    %24 = arith.mulf %22, %23 : vector<64x16xf32>
    %25 = arith.addf %19, %24 : vector<64x16xf32>
    %c0_4 = arith.constant 0 : index
    %c0_5 = arith.constant 0 : index
    %26 = vector.load %arg4[%c0_4, %c0_5] : memref<64x1xf32, #tpu.memory_space<vmem>>, vector<64x1xf32>
    %27 = vector.broadcast %26 : vector<64x1xf32> to vector<64x16xf32>
    %28 = arith.addf %25, %27 : vector<64x16xf32>
    %cst = arith.constant 0.000000e+00 : f32
    %29 = vector.broadcast %cst : f32 to vector<64x16xf32>
    %30 = arith.cmpf oge, %28, %29 : vector<64x16xf32>
    %cst_6 = arith.constant 2.000000e-01 : f32
    %31 = vector.broadcast %cst_6 : f32 to vector<64x16xf32>
    %32 = arith.mulf %31, %28 : vector<64x16xf32>
    %33 = arith.select %30, %28, %32 : vector<64x16xi1>, vector<64x16xf32>
    %c0_7 = arith.constant 0 : index
    %c0_8 = arith.constant 0 : index
    %34 = vector.load %arg5[%c0_7, %c0_8] : memref<64x64xbf16, #tpu.memory_space<vmem>>, vector<64x64xbf16>
    %35 = arith.truncf %33 : vector<64x16xf32> to vector<64x16xbf16>
    %cst_9 = arith.constant dense<0.000000e+00> : vector<64x16xf32>
    %36 = tpu.matmul %34, %35, %cst_9 {dimension_numbers = #tpu.dot_dimension_numbers<[1], [0], [0], [1], [0, 0, 1, 1], [], []>} : vector<64x64xbf16>, vector<64x16xbf16>, vector<64x16xf32> -> vector<64x16xf32>
    %c0_10 = arith.constant 0 : index
    %c0_11 = arith.constant 0 : index
    %37 = vector.load %arg6[%c0_10, %c0_11] : memref<64x1xf32, #tpu.memory_space<vmem>>, vector<64x1xf32>
    %38 = vector.broadcast %37 : vector<64x1xf32> to vector<64x16xf32>
    %39 = arith.addf %36, %38 : vector<64x16xf32>
    %cst_12 = arith.constant 0.000000e+00 : f32
    %40 = vector.broadcast %cst_12 : f32 to vector<64x16xf32>
    %41 = arith.cmpf oge, %39, %40 : vector<64x16xf32>
    %cst_13 = arith.constant 2.000000e-01 : f32
    %42 = vector.broadcast %cst_13 : f32 to vector<64x16xf32>
    %43 = arith.mulf %42, %39 : vector<64x16xf32>
    %44 = arith.select %41, %39, %43 : vector<64x16xi1>, vector<64x16xf32>
    %c0_14 = arith.constant 0 : index
    %c0_15 = arith.constant 0 : index
    %45 = vector.load %arg7[%c0_14, %c0_15] : memref<64x64xbf16, #tpu.memory_space<vmem>>, vector<64x64xbf16>
    %46 = arith.truncf %44 : vector<64x16xf32> to vector<64x16xbf16>
    %cst_16 = arith.constant dense<0.000000e+00> : vector<64x16xf32>
    %47 = tpu.matmul %45, %46, %cst_16 {dimension_numbers = #tpu.dot_dimension_numbers<[1], [0], [0], [1], [0, 0, 1, 1], [], []>} : vector<64x64xbf16>, vector<64x16xbf16>, vector<64x16xf32> -> vector<64x16xf32>
    %c0_17 = arith.constant 0 : index
    %c0_18 = arith.constant 0 : index
    %48 = vector.load %arg8[%c0_17, %c0_18] : memref<64x1xf32, #tpu.memory_space<vmem>>, vector<64x1xf32>
    %49 = vector.broadcast %48 : vector<64x1xf32> to vector<64x16xf32>
    %50 = arith.addf %47, %49 : vector<64x16xf32>
    %cst_19 = arith.constant 0.000000e+00 : f32
    %51 = vector.broadcast %cst_19 : f32 to vector<64x16xf32>
    %52 = arith.cmpf oge, %50, %51 : vector<64x16xf32>
    %cst_20 = arith.constant 2.000000e-01 : f32
    %53 = vector.broadcast %cst_20 : f32 to vector<64x16xf32>
    %54 = arith.mulf %53, %50 : vector<64x16xf32>
    %55 = arith.select %52, %50, %54 : vector<64x16xi1>, vector<64x16xf32>
    %c0_21 = arith.constant 0 : index
    %c0_22 = arith.constant 0 : index
    %56 = vector.load %arg9[%c0_21, %c0_22] : memref<128x64xbf16, #tpu.memory_space<vmem>>, vector<128x64xbf16>
    %57 = arith.truncf %55 : vector<64x16xf32> to vector<64x16xbf16>
    %cst_23 = arith.constant dense<0.000000e+00> : vector<128x16xf32>
    %58 = tpu.matmul %56, %57, %cst_23 {dimension_numbers = #tpu.dot_dimension_numbers<[1], [0], [0], [1], [0, 0, 1, 1], [], []>} : vector<128x64xbf16>, vector<64x16xbf16>, vector<128x16xf32> -> vector<128x16xf32>
    %c0_24 = arith.constant 0 : index
    %c0_25 = arith.constant 0 : index
    %59 = vector.load %arg10[%c0_24, %c0_25] : memref<128x1xf32, #tpu.memory_space<vmem>>, vector<128x1xf32>
    %60 = vector.broadcast %59 : vector<128x1xf32> to vector<128x16xf32>
    %61 = arith.addf %58, %60 : vector<128x16xf32>
    %cst_26 = arith.constant 0.000000e+00 : f32
    %62 = vector.broadcast %cst_26 : f32 to vector<128x16xf32>
    %63 = arith.cmpf oge, %61, %62 : vector<128x16xf32>
    %cst_27 = arith.constant 2.000000e-01 : f32
    %64 = vector.broadcast %cst_27 : f32 to vector<128x16xf32>
    %65 = arith.mulf %64, %61 : vector<128x16xf32>
    %66 = arith.select %63, %61, %65 : vector<128x16xi1>, vector<128x16xf32>
    %cst_28 = arith.constant dense<0xFF800000> : vector<16xf32>
    %67 = vector.multi_reduction <maximumf>, %66, %cst_28 [0] : vector<128x16xf32> to vector<16xf32>
    %68 = vector.shape_cast %67 : vector<16xf32> to vector<1x16xf32>
    %c0_29 = arith.constant 0 : index
    %c0_30 = arith.constant 0 : index
    %69 = vector.load %arg11[%c0_29, %c0_30] : memref<8x1xf32, #tpu.memory_space<vmem>>, vector<8x1xf32>
    %70 = vector.broadcast %68 : vector<1x16xf32> to vector<8x16xf32>
    %71 = vector.broadcast %69 : vector<8x1xf32> to vector<8x16xf32>
    %72 = arith.mulf %70, %71 : vector<8x16xf32>
    %c0_31 = arith.constant 0 : index
    %c0_32 = arith.constant 0 : index
    %73 = vector.load %arg12[%c0_31, %c0_32] : memref<8x1xf32, #tpu.memory_space<vmem>>, vector<8x1xf32>
    %74 = vector.broadcast %73 : vector<8x1xf32> to vector<8x16xf32>
    %75 = arith.addf %72, %74 : vector<8x16xf32>
    %c0_33 = arith.constant 0 : index
    %c0_34 = arith.constant 0 : index
    %c0_35 = arith.constant 0 : index
    %76 = vector.load %arg13[%c0_33, %c0_34, %c0_35] : memref<1x8x16xf32, #tpu.memory_space<vmem>>, vector<1x8x16xf32>
    %77 = vector.shape_cast %76 : vector<1x8x16xf32> to vector<8x16xf32>
    %78 = vector.shape_cast %75 : vector<8x16xf32> to vector<1x8x16xf32>
    tpu.vector_store %arg13[%c0_33, %c0_34, %c0_35], %78 {strides = array<i32>} : memref<1x8x16xf32, #tpu.memory_space<vmem>>, vector<1x8x16xf32>,
    %cst_36 = arith.constant dense<0xFF800000> : vector<16xf32>
    %79 = vector.multi_reduction <maximumf>, %75, %cst_36 [0] : vector<8x16xf32> to vector<16xf32>
    %80 = vector.shape_cast %79 : vector<16xf32> to vector<1x16xf32>
    %81 = vector.broadcast %80 : vector<1x16xf32> to vector<8x16xf32>
    %82 = arith.subf %75, %81 : vector<8x16xf32>
    %83 = math.exp %82 : vector<8x16xf32>
    %cst_37 = arith.constant dense<0.000000e+00> : vector<16xf32>
    %84 = vector.multi_reduction <add>, %83, %cst_37 [0] : vector<8x16xf32> to vector<16xf32>
    %85 = vector.shape_cast %84 : vector<16xf32> to vector<1x16xf32>
    %86 = math.log %85 : vector<1x16xf32>
    %87 = arith.addf %80, %86 : vector<1x16xf32>
    %cst_38 = arith.constant 1.000000e+00 : f32
    %88 = vector.broadcast %cst_38 : f32 to vector<1x16xf32>
    %89 = arith.addf %87, %88 : vector<1x16xf32>
    %90 = tpu.reciprocal %89 {approx = true} : vector<1x16xf32> -> vector<1x16xf32>
    %91 = arith.mulf %87, %90 : vector<1x16xf32>
    %c0_39 = arith.constant 0 : index
    %c0_40 = arith.constant 0 : index
    %c0_41 = arith.constant 0 : index
    %92 = vector.load %arg14[%c0_39, %c0_40, %c0_41] : memref<1x1x16xf32, #tpu.memory_space<vmem>>, vector<1x1x16xf32>
    %93 = vector.shape_cast %92 : vector<1x1x16xf32> to vector<1x16xf32>
    %94 = vector.shape_cast %91 : vector<1x16xf32> to vector<1x1x16xf32>
    tpu.vector_store %arg14[%c0_39, %c0_40, %c0_41], %94 {strides = array<i32>} : memref<1x1x16xf32, #tpu.memory_space<vmem>>, vector<1x1x16xf32>,
    return
  }
  func.func @transform_0(%arg0: i32, %arg1: i32) -> (i32, i32, i32) {
    %c0_i32 = arith.constant 0 : i32
    %c0_i32_0 = arith.constant 0 : i32
    return %arg0, %c0_i32, %arg1 : i32, i32, i32
  }
  func.func @transform_1(%arg0: i32, %arg1: i32) -> (i32, i32) {
    %c0_i32 = arith.constant 0 : i32
    %c0_i32_0 = arith.constant 0 : i32
    %c0_i32_1 = arith.constant 0 : i32
    return %c0_i32, %c0_i32_0 : i32, i32
  }
  func.func @transform_2(%arg0: i32, %arg1: i32) -> (i32, i32) {
    %c0_i32 = arith.constant 0 : i32
    %c0_i32_0 = arith.constant 0 : i32
    %c0_i32_1 = arith.constant 0 : i32
    return %c0_i32, %c0_i32_0 : i32, i32
  }
  func.func @transform_3(%arg0: i32, %arg1: i32) -> (i32, i32) {
    %c0_i32 = arith.constant 0 : i32
    %c0_i32_0 = arith.constant 0 : i32
    %c0_i32_1 = arith.constant 0 : i32
    return %c0_i32, %c0_i32_0 : i32, i32
  }
  func.func @transform_4(%arg0: i32, %arg1: i32) -> (i32, i32) {
    %c0_i32 = arith.constant 0 : i32
    %c0_i32_0 = arith.constant 0 : i32
    %c0_i32_1 = arith.constant 0 : i32
    return %c0_i32, %c0_i32_0 : i32, i32
  }
  func.func @transform_5(%arg0: i32, %arg1: i32) -> (i32, i32) {
    %c0_i32 = arith.constant 0 : i32
    %c0_i32_0 = arith.constant 0 : i32
    %c0_i32_1 = arith.constant 0 : i32
    return %c0_i32, %c0_i32_0 : i32, i32
  }
  func.func @transform_6(%arg0: i32, %arg1: i32) -> (i32, i32) {
    %c0_i32 = arith.constant 0 : i32
    %c0_i32_0 = arith.constant 0 : i32
    %c0_i32_1 = arith.constant 0 : i32
    return %c0_i32, %c0_i32_0 : i32, i32
  }
  func.func @transform_7(%arg0: i32, %arg1: i32) -> (i32, i32) {
    %c0_i32 = arith.constant 0 : i32
    %c0_i32_0 = arith.constant 0 : i32
    %c0_i32_1 = arith.constant 0 : i32
    return %c0_i32, %c0_i32_0 : i32, i32
  }
  func.func @transform_8(%arg0: i32, %arg1: i32) -> (i32, i32) {
    %c0_i32 = arith.constant 0 : i32
    %c0_i32_0 = arith.constant 0 : i32
    %c0_i32_1 = arith.constant 0 : i32
    return %c0_i32, %c0_i32_0 : i32, i32
  }
  func.func @transform_9(%arg0: i32, %arg1: i32) -> (i32, i32) {
    %c0_i32 = arith.constant 0 : i32
    %c0_i32_0 = arith.constant 0 : i32
    %c0_i32_1 = arith.constant 0 : i32
    return %c0_i32, %c0_i32_0 : i32, i32
  }
  func.func @transform_10(%arg0: i32, %arg1: i32) -> (i32, i32) {
    %c0_i32 = arith.constant 0 : i32
    %c0_i32_0 = arith.constant 0 : i32
    %c0_i32_1 = arith.constant 0 : i32
    return %c0_i32, %c0_i32_0 : i32, i32
  }
  func.func @transform_11(%arg0: i32, %arg1: i32) -> (i32, i32, i32) {
    %c0_i32 = arith.constant 0 : i32
    %c0_i32_0 = arith.constant 0 : i32
    return %arg0, %c0_i32, %arg1 : i32, i32, i32
  }
  func.func @transform_12(%arg0: i32, %arg1: i32) -> (i32, i32, i32) {
    %c0_i32 = arith.constant 0 : i32
    %c0_i32_0 = arith.constant 0 : i32
    return %arg0, %c0_i32, %arg1 : i32, i32, i32
  }
}

</mosaic_0001>

<llo_original>
// kernel: stack_disc_net.1
$region0: #{stack_disc_net.1}
  #allocation0 [shape = 'u32[]', space=smem, size = 0x4, offset = 0x4, fixed_abs, tag = 'smem constant byte address 0x4 - core index']
  #allocation1 [shape = 'u32[144,128]{1,0:T(1,128)}', space=vmem, size = 0x12000, scoped, tag = 'internal scratch']
  %s0 = inlined_call_operand.vmem [shape: f32[2,4,16], index: 0, kind: input, shape index: {}]
  %s1 = inlined_call_operand.vmem [shape: f32[64,4], index: 1, kind: input, shape index: {}]
  %s2 = inlined_call_operand.vmem [shape: f32[64,1], index: 2, kind: input, shape index: {}]
  %s3 = inlined_call_operand.vmem [shape: bf16[64,64], index: 3, kind: input, shape index: {}]
  %s4 = inlined_call_operand.vmem [shape: f32[64,1], index: 4, kind: input, shape index: {}]
  %s5 = inlined_call_operand.vmem [shape: bf16[64,64], index: 5, kind: input, shape index: {}]
  %s6 = inlined_call_operand.vmem [shape: f32[64,1], index: 6, kind: input, shape index: {}]
  %s7 = inlined_call_operand.vmem [shape: bf16[128,64], index: 7, kind: input, shape index: {}]
  %s8 = inlined_call_operand.vmem [shape: f32[128,1], index: 8, kind: input, shape index: {}]
  %s9 = inlined_call_operand.vmem [shape: f32[8,1], index: 9, kind: input, shape index: {}]
  %s10 = inlined_call_operand.vmem [shape: f32[8,1], index: 10, kind: input, shape index: {}]
  %s11 = inlined_call_operand.hbm [shape: f32[2,8,16], index: 11, kind: output, shape index: {0}]
  %s12 = inlined_call_operand.hbm [shape: f32[2,1,16], index: 12, kind: output, shape index: {1}]
  %13 = xla_tuple %s11, %s12
  %s14 = sld [smem:[#allocation0]]
  $region85: #{stack_disc_net.1} parent=0
    _
  %s16 = ssub.s32 1, %s14
  %s17 = scalar_select 0, %s16, %s14
  $region1: #{stack_disc_net.1} parent=0
    #allocation2 [shape = 'u8[8192]{0}', space=vmem, size = 0x2000, scoped, tag = 'output window, operand 0']
    #allocation3 [shape = 's32[2]{0}', space=sflag, size = 0x8, scoped, tag = 'scoped memory for stack_disc_net.1']
    #allocation4 [shape = 'u8[1024]{0}', space=vmem, size = 0x400, scoped, tag = 'output window, operand 1']
    #allocation5 [shape = 's32[2]{0}', space=sflag, size = 0x8, scoped, tag = 'scoped memory for stack_disc_net.1']
    %18 = vsyncpa [#allocation3], 0
    %s19 = scalar_lea.sflag [#allocation3], 1
    %20 = vsyncpa %s19, 0
    %21 = vsyncpa [#allocation5], 0
    %s22 = scalar_lea.sflag [#allocation5], 1
    %23 = vsyncpa %s22, 0
    loop: start=0, step=1, limit=4
    $region2: #{stack_disc_net.1} parent=1 // loop_pre_header
      _
    $region3: #{stack_disc_net.1} parent=1 // loop_header
      %s25 = sphi 0, %s29
      %p26 = scmp.ge.s32.totalorder %s25, 4
      %s32 = sphi 0, %s44
      %s33 = sphi 0, %s40
      %s34 = sphi 0, %s32
      %s35 = sphi 0, %s33
      %s36 = sphi 0, %s34
      %s37 = sphi 0, %s35
      %s49 = sphi 0, %s51
      %s52 = sphi 0, %s49
      %s53 = sphi 0, %s52
      %s69 = sphi 0, %s53
      %s73 = sphi 0, %s73
      %s75 = sphi 0, %s73
      %s76 = sphi 0, %s75
      %s90 = sphi 0, %s76
      %s94 = sphi 0, %s94
      %s96 = sphi 0, %s94
      %s97 = sphi 0, %s96
      %s111 = sphi 0, %s97
      %s115 = sphi 0, %s115
      %s117 = sphi 0, %s115
      %s118 = sphi 0, %s117
      %s132 = sphi 0, %s118
      %s136 = sphi 0, %s136
      %s138 = sphi 0, %s136
      %s139 = sphi 0, %s138
      %s153 = sphi 0, %s139
      %s157 = sphi 0, %s157
      %s159 = sphi 0, %s157
      %s160 = sphi 0, %s159
      %s174 = sphi 0, %s160
      %s178 = sphi 0, %s178
      %s180 = sphi 0, %s178
      %s181 = sphi 0, %s180
      %s195 = sphi 0, %s181
      %s199 = sphi 0, %s199
      %s201 = sphi 0, %s199
      %s202 = sphi 0, %s201
      %s216 = sphi 0, %s202
      %s220 = sphi 0, %s220
      %s222 = sphi 0, %s220
      %s223 = sphi 0, %s222
      %s237 = sphi 0, %s223
      %s241 = sphi 0, %s241
      %s243 = sphi 0, %s241
      %s244 = sphi 0, %s243
      %s258 = sphi 0, %s244
      %s262 = sphi 0, %s262
      %s264 = sphi 0, %s262
      %s265 = sphi 0, %s264
      %s279 = sphi 0, %s265
      %s287 = sphi 0, %s289
      %s290 = sphi 0, %s287
      %s291 = sphi 0, %s290
      %s307 = sphi 0, %s291
      %s315 = sphi 0, %s317
      %s318 = sphi 0, %s315
      %s319 = sphi 0, %s318
      %s335 = sphi 0, %s319
    $region4: #{stack_disc_net.1} parent=1 // loop_header_branch
      %28 = sbr.rel (%p26) target = $region8
    $region5: #{stack_disc_net.1} parent=1 // loop_body
      %s30 = ssub.s32 %s25, 1
      %s31 = ssub.s32 %s25, 2
      %s38 = sadd.s32 1, %s33
      %p39 = scmp.ge.s32.totalorder %s38, 1
      %s40 = scalar_select %p39, 0, %s38
      %s41 = sadd.s32 1, %s32
      %s42 = scalar_select %p39, %s41, %s32
      %p43 = scmp.ge.s32.totalorder %s42, 2
      %s44 = scalar_select %p43, 0, %s42
      %s45 = ssub.s32 %s32, %s44
      %s46 = ssub.s32 %s33, %s40
      %s47 = sor.u32 %s45, %s46
      %p48 = scmp.eq.s32.totalorder %s47, 0
      %s50 = sadd.s32 %s49, 1
      %s51 = scalar_select %p48, %s49, %s50
      %p54 = pneg %p48
      %p55 = scmp.eq.s32.totalorder %s25, 1
      %p56 = por %p54, %p55
      %p57 = scmp.ne.s32.totalorder %s49, %s52
      %p58 = scmp.eq.s32.totalorder %s25, 0
      %p59 = por %p57, %p58
      %p60 = scmp.ne.s32.totalorder %s49, %s52
      %p61 = scmp.eq.s32.totalorder %s30, 1
      %p62 = por %p60, %p61
      %p63 = scmp.ne.s32.totalorder %s52, %s53
      %p64 = scmp.eq.s32.totalorder %s30, 0
      %p65 = por %p63, %p64
      %p66 = scmp.ne.s32.totalorder %s52, %s53
      %p67 = scmp.eq.s32.totalorder %s31, 1
      %p68 = por %p66, %p67
      %p70 = scmp.ne.s32.totalorder %s53, %s69
      %p71 = scmp.eq.s32.totalorder %s31, 0
      %p72 = por %p70, %p71
      %s74 = sadd.s32 %s73, 1
      %p77 = scmp.eq.s32.totalorder %s25, 1
      %p78 = scmp.ne.s32.totalorder %s73, %s75
      %p79 = scmp.eq.s32.totalorder %s25, 0
      %p80 = por %p78, %p79
      %p81 = scmp.ne.s32.totalorder %s73, %s75
      %p82 = scmp.eq.s32.totalorder %s30, 1
      %p83 = por %p81, %p82
      %p84 = scmp.ne.s32.totalorder %s75, %s76
      %p85 = scmp.eq.s32.totalorder %s30, 0
      %p86 = por %p84, %p85
      %p87 = scmp.ne.s32.totalorder %s75, %s76
      %p88 = scmp.eq.s32.totalorder %s31, 1
      %p89 = por %p87, %p88
      %p91 = scmp.ne.s32.totalorder %s76, %s90
      %p92 = scmp.eq.s32.totalorder %s31, 0
      %p93 = por %p91, %p92
      %s95 = sadd.s32 %s94, 1
      %p98 = scmp.eq.s32.totalorder %s25, 1
      %p99 = scmp.ne.s32.totalorder %s94, %s96
      %p100 = scmp.eq.s32.totalorder %s25, 0
      %p101 = por %p99, %p100
      %p102 = scmp.ne.s32.totalorder %s94, %s96
      %p103 = scmp.eq.s32.totalorder %s30, 1
      %p104 = por %p102, %p103
      %p105 = scmp.ne.s32.totalorder %s96, %s97
      %p106 = scmp.eq.s32.totalorder %s30, 0
      %p107 = por %p105, %p106
      %p108 = scmp.ne.s32.totalorder %s96, %s97
      %p109 = scmp.eq.s32.totalorder %s31, 1
      %p110 = por %p108, %p109
      %p112 = scmp.ne.s32.totalorder %s97, %s111
      %p113 = scmp.eq.s32.totalorder %s31, 0
      %p114 = por %p112, %p113
      %s116 = sadd.s32 %s115, 1
      %p119 = scmp.eq.s32.totalorder %s25, 1
      %p120 = scmp.ne.s32.totalorder %s115, %s117
      %p121 = scmp.eq.s32.totalorder %s25, 0
      %p122 = por %p120, %p121
      %p123 = scmp.ne.s32.totalorder %s115, %s117
      %p124 = scmp.eq.s32.totalorder %s30, 1
      %p125 = por %p123, %p124
      %p126 = scmp.ne.s32.totalorder %s117, %s118
      %p127 = scmp.eq.s32.totalorder %s30, 0
      %p128 = por %p126, %p127
      %p129 = scmp.ne.s32.totalorder %s117, %s118
      %p130 = scmp.eq.s32.totalorder %s31, 1
      %p131 = por %p129, %p130
      %p133 = scmp.ne.s32.totalorder %s118, %s132
      %p134 = scmp.eq.s32.totalorder %s31, 0
      %p135 = por %p133, %p134
      %s137 = sadd.s32 %s136, 1
      %p140 = scmp.eq.s32.totalorder %s25, 1
      %p141 = scmp.ne.s32.totalorder %s136, %s138
      %p142 = scmp.eq.s32.totalorder %s25, 0
      %p143 = por %p141, %p142
      %p144 = scmp.ne.s32.totalorder %s136, %s138
      %p145 = scmp.eq.s32.totalorder %s30, 1
      %p146 = por %p144, %p145
      %p147 = scmp.ne.s32.totalorder %s138, %s139
      %p148 = scmp.eq.s32.totalorder %s30, 0
      %p149 = por %p147, %p148
      %p150 = scmp.ne.s32.totalorder %s138, %s139
      %p151 = scmp.eq.s32.totalorder %s31, 1
      %p152 = por %p150, %p151
      %p154 = scmp.ne.s32.totalorder %s139, %s153
      %p155 = scmp.eq.s32.totalorder %s31, 0
      %p156 = por %p154, %p155
      %s158 = sadd.s32 %s157, 1
      %p161 = scmp.eq.s32.totalorder %s25, 1
      %p162 = scmp.ne.s32.totalorder %s157, %s159
      %p163 = scmp.eq.s32.totalorder %s25, 0
      %p164 = por %p162, %p163
      %p165 = scmp.ne.s32.totalorder %s157, %s159
      %p166 = scmp.eq.s32.totalorder %s30, 1
      %p167 = por %p165, %p166
      %p168 = scmp.ne.s32.totalorder %s159, %s160
      %p169 = scmp.eq.s32.totalorder %s30, 0
      %p170 = por %p168, %p169
      %p171 = scmp.ne.s32.totalorder %s159, %s160
      %p172 = scmp.eq.s32.totalorder %s31, 1
      %p173 = por %p171, %p172
      %p175 = scmp.ne.s32.totalorder %s160, %s174
      %p176 = scmp.eq.s32.totalorder %s31, 0
      %p177 = por %p175, %p176
      %s179 = sadd.s32 %s178, 1
      %p182 = scmp.eq.s32.totalorder %s25, 1
      %p183 = scmp.ne.s32.totalorder %s178, %s180
      %p184 = scmp.eq.s32.totalorder %s25, 0
      %p185 = por %p183, %p184
      %p186 = scmp.ne.s32.totalorder %s178, %s180
      %p187 = scmp.eq.s32.totalorder %s30, 1
      %p188 = por %p186, %p187
      %p189 = scmp.ne.s32.totalorder %s180, %s181
      %p190 = scmp.eq.s32.totalorder %s30, 0
      %p191 = por %p189, %p190
      %p192 = scmp.ne.s32.totalorder %s180, %s181
      %p193 = scmp.eq.s32.totalorder %s31, 1
      %p194 = por %p192, %p193
      %p196 = scmp.ne.s32.totalorder %s181, %s195
      %p197 = scmp.eq.s32.totalorder %s31, 0
      %p198 = por %p196, %p197
      %s200 = sadd.s32 %s199, 1
      %p203 = scmp.eq.s32.totalorder %s25, 1
      %p204 = scmp.ne.s32.totalorder %s199, %s201
      %p205 = scmp.eq.s32.totalorder %s25, 0
      %p206 = por %p204, %p205
      %p207 = scmp.ne.s32.totalorder %s199, %s201
      %p208 = scmp.eq.s32.totalorder %s30, 1
      %p209 = por %p207, %p208
      %p210 = scmp.ne.s32.totalorder %s201, %s202
      %p211 = scmp.eq.s32.totalorder %s30, 0
      %p212 = por %p210, %p211
      %p213 = scmp.ne.s32.totalorder %s201, %s202
      %p214 = scmp.eq.s32.totalorder %s31, 1
      %p215 = por %p213, %p214
      %p217 = scmp.ne.s32.totalorder %s202, %s216
      %p218 = scmp.eq.s32.totalorder %s31, 0
      %p219 = por %p217, %p218
      %s221 = sadd.s32 %s220, 1
      %p224 = scmp.eq.s32.totalorder %s25, 1
      %p225 = scmp.ne.s32.totalorder %s220, %s222
      %p226 = scmp.eq.s32.totalorder %s25, 0
      %p227 = por %p225, %p226
      %p228 = scmp.ne.s32.totalorder %s220, %s222
      %p229 = scmp.eq.s32.totalorder %s30, 1
      %p230 = por %p228, %p229
      %p231 = scmp.ne.s32.totalorder %s222, %s223
      %p232 = scmp.eq.s32.totalorder %s30, 0
      %p233 = por %p231, %p232
      %p234 = scmp.ne.s32.totalorder %s222, %s223
      %p235 = scmp.eq.s32.totalorder %s31, 1
      %p236 = por %p234, %p235
      %p238 = scmp.ne.s32.totalorder %s223, %s237
      %p239 = scmp.eq.s32.totalorder %s31, 0
      %p240 = por %p238, %p239
      %s242 = sadd.s32 %s241, 1
      %p245 = scmp.eq.s32.totalorder %s25, 1
      %p246 = scmp.ne.s32.totalorder %s241, %s243
      %p247 = scmp.eq.s32.totalorder %s25, 0
      %p248 = por %p246, %p247
      %p249 = scmp.ne.s32.totalorder %s241, %s243
      %p250 = scmp.eq.s32.totalorder %s30, 1
      %p251 = por %p249, %p250
      %p252 = scmp.ne.s32.totalorder %s243, %s244
      %p253 = scmp.eq.s32.totalorder %s30, 0
      %p254 = por %p252, %p253
      %p255 = scmp.ne.s32.totalorder %s243, %s244
      %p256 = scmp.eq.s32.totalorder %s31, 1
      %p257 = por %p255, %p256
      %p259 = scmp.ne.s32.totalorder %s244, %s258
      %p260 = scmp.eq.s32.totalorder %s31, 0
      %p261 = por %p259, %p260
      %s263 = sadd.s32 %s262, 1
      %p266 = scmp.eq.s32.totalorder %s25, 1
      %p267 = scmp.ne.s32.totalorder %s262, %s264
      %p268 = scmp.eq.s32.totalorder %s25, 0
      %p269 = por %p267, %p268
      %p270 = scmp.ne.s32.totalorder %s262, %s264
      %p271 = scmp.eq.s32.totalorder %s30, 1
      %p272 = por %p270, %p271
      %p273 = scmp.ne.s32.totalorder %s264, %s265
      %p274 = scmp.eq.s32.totalorder %s30, 0
      %p275 = por %p273, %p274
      %p276 = scmp.ne.s32.totalorder %s264, %s265
      %p277 = scmp.eq.s32.totalorder %s31, 1
      %p278 = por %p276, %p277
      %p280 = scmp.ne.s32.totalorder %s265, %s279
      %p281 = scmp.eq.s32.totalorder %s31, 0
      %p282 = por %p280, %p281
      %s283 = ssub.s32 %s32, %s44
      %s284 = ssub.s32 %s33, %s40
      %s285 = sor.u32 %s283, %s284
      %p286 = scmp.eq.s32.totalorder %s285, 0
      %s288 = sadd.s32 %s287, 1
      %s289 = scalar_select %p286, %s287, %s288
      %p292 = pneg %p286
      %p293 = scmp.eq.s32.totalorder %s25, 1
      %p294 = por %p292, %p293
      %p295 = scmp.ne.s32.totalorder %s287, %s290
      %p296 = scmp.eq.s32.totalorder %s25, 0
      %p297 = por %p295, %p296
      %p298 = scmp.ne.s32.totalorder %s287, %s290
      %p299 = scmp.eq.s32.totalorder %s30, 1
      %p300 = por %p298, %p299
      %p301 = scmp.ne.s32.totalorder %s290, %s291
      %p302 = scmp.eq.s32.totalorder %s30, 0
      %p303 = por %p301, %p302
      %p304 = scmp.ne.s32.totalorder %s290, %s291
      %p305 = scmp.eq.s32.totalorder %s31, 1
      %p306 = por %p304, %p305
      %p308 = scmp.ne.s32.totalorder %s291, %s307
      %p309 = scmp.eq.s32.totalorder %s31, 0
      %p310 = por %p308, %p309
      %s311 = ssub.s32 %s32, %s44
      %s312 = ssub.s32 %s33, %s40
      %s313 = sor.u32 %s311, %s312
      %p314 = scmp.eq.s32.totalorder %s313, 0
      %s316 = sadd.s32 %s315, 1
      %s317 = scalar_select %p314, %s315, %s316
      %p320 = pneg %p314
      %p321 = scmp.eq.s32.totalorder %s25, 1
      %p322 = por %p320, %p321
      %p323 = scmp.ne.s32.totalorder %s315, %s318
      %p324 = scmp.eq.s32.totalorder %s25, 0
      %p325 = por %p323, %p324
      %p326 = scmp.ne.s32.totalorder %s315, %s318
      %p327 = scmp.eq.s32.totalorder %s30, 1
      %p328 = por %p326, %p327
      %p329 = scmp.ne.s32.totalorder %s318, %s319
      %p330 = scmp.eq.s32.totalorder %s30, 0
      %p331 = por %p329, %p330
      %p332 = scmp.ne.s32.totalorder %s318, %s319
      %p333 = scmp.eq.s32.totalorder %s31, 1
      %p334 = por %p332, %p333
      %p336 = scmp.ne.s32.totalorder %s319, %s335
      %p337 = scmp.eq.s32.totalorder %s31, 0
      %p338 = por %p336, %p337
      %p339 = scmp.le.s32.totalorder 1, %s25
      %p340 = scmp.lt.s32.totalorder %s25, 3
      %p341 = pnand %p339, %p340
      %p342 = pneg %p341
      // Predicated region
      $region9: #{stack_disc_net.1} parent=5 // pred_check
        _
      $region10: #{stack_disc_net.1} parent=5 // pred_check_branch
        %344 = sbr.rel (%p341) target = $region12
      $region11: #{stack_disc_net.1} parent=5 // pred_region
        %s345 = ssub.s32 %s25, 1
        // Predicated region
        $region13: #{stack_disc_net.1} parent=11 // pred_check
          %p346 = pneg %p86
        $region14: #{stack_disc_net.1} parent=11 // pred_check_branch
          %348 = sbr.rel (%p346) target = $region16
        $region15: #{stack_disc_net.1} parent=11 // pred_region
          _
        $region16: #{stack_disc_net.1} parent=11 // pred_fallthru
          _
        // Predicated region
        $region17: #{stack_disc_net.1} parent=11 // pred_check
          %p349 = pneg %p107
        $region18: #{stack_disc_net.1} parent=11 // pred_check_branch
          %351 = sbr.rel (%p349) target = $region20
        $region19: #{stack_disc_net.1} parent=11 // pred_region
          _
        $region20: #{stack_disc_net.1} parent=11 // pred_fallthru
          _
        // Predicated region
        $region21: #{stack_disc_net.1} parent=11 // pred_check
          %p352 = pneg %p128
        $region22: #{stack_disc_net.1} parent=11 // pred_check_branch
          %354 = sbr.rel (%p352) target = $region24
        $region23: #{stack_disc_net.1} parent=11 // pred_region
          _
        $region24: #{stack_disc_net.1} parent=11 // pred_fallthru
          _
        // Predicated region
        $region25: #{stack_disc_net.1} parent=11 // pred_check
          %p355 = pneg %p149
        $region26: #{stack_disc_net.1} parent=11 // pred_check_branch
          %357 = sbr.rel (%p355) target = $region28
        $region27: #{stack_disc_net.1} parent=11 // pred_region
          _
        $region28: #{stack_disc_net.1} parent=11 // pred_fallthru
          _
        // Predicated region
        $region29: #{stack_disc_net.1} parent=11 // pred_check
          %p358 = pneg %p170
        $region30: #{stack_disc_net.1} parent=11 // pred_check_branch
          %360 = sbr.rel (%p358) target = $region32
        $region31: #{stack_disc_net.1} parent=11 // pred_region
          _
        $region32: #{stack_disc_net.1} parent=11 // pred_fallthru
          _
        // Predicated region
        $region33: #{stack_disc_net.1} parent=11 // pred_check
          %p361 = pneg %p191
        $region34: #{stack_disc_net.1} parent=11 // pred_check_branch
          %363 = sbr.rel (%p361) target = $region36
        $region35: #{stack_disc_net.1} parent=11 // pred_region
          _
        $region36: #{stack_disc_net.1} parent=11 // pred_fallthru
          _
        // Predicated region
        $region37: #{stack_disc_net.1} parent=11 // pred_check
          %p364 = pneg %p212
        $region38: #{stack_disc_net.1} parent=11 // pred_check_branch
          %366 = sbr.rel (%p364) target = $region40
        $region39: #{stack_disc_net.1} parent=11 // pred_region
          _
        $region40: #{stack_disc_net.1} parent=11 // pred_fallthru
          _
        // Predicated region
        $region41: #{stack_disc_net.1} parent=11 // pred_check
          %p367 = pneg %p233
        $region42: #{stack_disc_net.1} parent=11 // pred_check_branch
          %369 = sbr.rel (%p367) target = $region44
        $region43: #{stack_disc_net.1} parent=11 // pred_region
          _
        $region44: #{stack_disc_net.1} parent=11 // pred_fallthru
          _
        // Predicated region
        $region45: #{stack_disc_net.1} parent=11 // pred_check
          %p370 = pneg %p254
        $region46: #{stack_disc_net.1} parent=11 // pred_check_branch
          %372 = sbr.rel (%p370) target = $region48
        $region47: #{stack_disc_net.1} parent=11 // pred_region
          _
        $region48: #{stack_disc_net.1} parent=11 // pred_fallthru
          _
        // Predicated region
        $region49: #{stack_disc_net.1} parent=11 // pred_check
          %p373 = pneg %p275
        $region50: #{stack_disc_net.1} parent=11 // pred_check_branch
          %375 = sbr.rel (%p373) target = $region52
        $region51: #{stack_disc_net.1} parent=11 // pred_region
          _
        $region52: #{stack_disc_net.1} parent=11 // pred_fallthru
          _
      $region12: #{stack_disc_net.1} parent=5 // pred_fallthru
        _
      %p376 = scmp.lt.s32.totalorder %s25, 2
      // Predicated region
      $region53: #{stack_disc_net.1} parent=5 // pred_check
        %p377 = pneg %p376
      $region54: #{stack_disc_net.1} parent=5 // pred_check_branch
        %379 = sbr.rel (%p377) target = $region56
      $region55: #{stack_disc_net.1} parent=5 // pred_region
        // Predicated region
        $region57: #{stack_disc_net.1} parent=55 // pred_check
          %p380 = pneg %p59
        $region58: #{stack_disc_net.1} parent=55 // pred_check_branch
          %382 = sbr.rel (%p380) target = $region60
        $region59: #{stack_disc_net.1} parent=55 // pred_region
          %p383 = scmp.lt.s32.totalorder %s32, 1
          %s384 = scalar_select %p383, %s32, 1
          %p385 = scmp.lt.s32.totalorder %s33, 0
          %s386 = scalar_select %p385, %s33, 0
          %s387 = sadd.s32 %s386, %s384
          %s388 = smul.addr %s387, 4
          %s389 = scalar_lea.vmem %s0, %s388
        $region60: #{stack_disc_net.1} parent=55 // pred_fallthru
          _
      $region56: #{stack_disc_net.1} parent=5 // pred_fallthru
        _
      %p390 = scmp.le.s32.totalorder 1, %s25
      %p391 = scmp.lt.s32.totalorder %s25, 3
      %p392 = pnand %p390, %p391
      %p393 = pneg %p392
      // Predicated region
      $region61: #{stack_disc_net.1} parent=5 // pred_check
        _
      $region62: #{stack_disc_net.1} parent=5 // pred_check_branch
        %395 = sbr.rel (%p392) target = $region64
      $region63: #{stack_disc_net.1} parent=5 // pred_region
        %s396 = ssub.s32 %s25, 1
        %p397 = scmp.lt.s32.totalorder %s34, 1
        %s398 = scalar_select %p397, %s34, 1
        %p399 = scmp.lt.s32.totalorder %s35, 0
        %s400 = scalar_select %p399, %s35, 0
        %s401 = sadd.s32 %s400, %s398
        %s402 = smul.addr %s401, 4
        %s403 = scalar_lea.vmem %s0, %s402
        %p404 = pneg %p65
        %p405 = pneg %p62
        %p406 = pneg %p86
        %p407 = pneg %p83
        %p408 = pneg %p107
        %p409 = pneg %p104
        %p410 = pneg %p128
        %p411 = pneg %p125
        %p412 = pneg %p149
        %p413 = pneg %p146
        %p414 = pneg %p170
        %p415 = pneg %p167
        %p416 = pneg %p191
        %p417 = pneg %p188
        %p418 = pneg %p212
        %p419 = pneg %p209
        %p420 = pneg %p233
        %p421 = pneg %p230
        %p422 = pneg %p254
        %p423 = pneg %p251
        %p424 = pneg %p275
        %p425 = pneg %p272
        %p426 = pneg %p303
        %p427 = pneg %p300
        %s428 = sand.u32 %s290, 1
        %s429 = scalar_lea.sflag [#allocation3], %s428
        %s430 = sand.u32 %s290, 1
        %s431 = smul.addr %s430, 8
        %s432 = scalar_lea.vmem [#allocation2], %s431
        %p433 = pneg %p331
        %p434 = pneg %p328
        %s435 = sand.u32 %s318, 1
        %s436 = scalar_lea.sflag [#allocation5], %s435
        %s437 = sand.u32 %s318, 1
        %s438 = scalar_lea.vmem [#allocation4], %s437
        %p439 = scmp.lt.s32.totalorder %s34, 1
        %s440 = scalar_select %p439, %s34, 1
        %p441 = scmp.lt.s32.totalorder %s35, 0
        %s442 = scalar_select %p441, %s35, 0
        %s443 = sadd.s32 %s442, %s440
        %s444 = smul.addr %s443, 4
        %s445 = scalar_lea.vmem %s0, %s444
        %v447 = vld [vmem:[%s445] sm:$0xf]
        %v448 = vld [vmem:[%s1] sm:$0xff]
        %v449 = vld [vmem:[%s1 + $0x8] sm:$0xff]
        %v450 = vld [vmem:[%s1 + $0x10] sm:$0xff]
        %v451 = vld [vmem:[%s1 + $0x18] sm:$0xff]
        %v452 = vld [vmem:[%s1 + $0x20] sm:$0xff]
        %v453 = vld [vmem:[%s1 + $0x28] sm:$0xff]
        %v454 = vld [vmem:[%s1 + $0x30] sm:$0xff]
        %v455 = vld [vmem:[%s1 + $0x38] sm:$0xff]
        %457 = vset.pattern.permute.xlu0 0
        %458 = vperm.xlu0 %457, %v448
        %v459 = vpop.permute.xlu0 %458
        %462 = vset.pattern.permute.xlu0 0
        %463 = vperm.xlu0 %462, %v449
        %v464 = vpop.permute.xlu0 %463
        %467 = vset.pattern.permute.xlu0 0
        %468 = vperm.xlu0 %467, %v450
        %v469 = vpop.permute.xlu0 %468
        %472 = vset.pattern.permute.xlu0 0
        %473 = vperm.xlu0 %472, %v451
        %v474 = vpop.permute.xlu0 %473
        %477 = vset.pattern.permute.xlu0 0
        %478 = vperm.xlu0 %477, %v452
        %v479 = vpop.permute.xlu0 %478
        %482 = vset.pattern.permute.xlu0 0
        %483 = vperm.xlu0 %482, %v453
        %v484 = vpop.permute.xlu0 %483
        %487 = vset.pattern.permute.xlu0 0
        %488 = vperm.xlu0 %487, %v454
        %v489 = vpop.permute.xlu0 %488
        %492 = vset.pattern.permute.xlu0 0
        %493 = vperm.xlu0 %492, %v455
        %v494 = vpop.permute.xlu0 %493
        %v496 = vlaneseq
        %v497 = vshrl.u32 %v496, 7
        %v498 = vsub.s32 0, %v497
        %v499 = vrot.slane %v447, %v498
        %v500 = vmul.f32 %v459, %v499
        %v501 = vmul.f32 %v464, %v499
        %v502 = vmul.f32 %v469, %v499
        %v503 = vmul.f32 %v474, %v499
        %v504 = vmul.f32 %v479, %v499
        %v505 = vmul.f32 %v484, %v499
        %v506 = vmul.f32 %v489, %v499
        %v507 = vmul.f32 %v494, %v499
        %508 = vset.pattern.permute.xlu0 1
        %509 = vperm.xlu0 %508, %v448
        %v510 = vpop.permute.xlu0 %509
        %512 = vset.pattern.permute.xlu0 1
        %513 = vperm.xlu0 %512, %v449
        %v514 = vpop.permute.xlu0 %513
        %516 = vset.pattern.permute.xlu0 1
        %517 = vperm.xlu0 %516, %v450
        %v518 = vpop.permute.xlu0 %517
        %520 = vset.pattern.permute.xlu0 1
        %521 = vperm.xlu0 %520, %v451
        %v522 = vpop.permute.xlu0 %521
        %524 = vset.pattern.permute.xlu0 1
        %525 = vperm.xlu0 %524, %v452
        %v526 = vpop.permute.xlu0 %525
        %528 = vset.pattern.permute.xlu0 1
        %529 = vperm.xlu0 %528, %v453
        %v530 = vpop.permute.xlu0 %529
        %532 = vset.pattern.permute.xlu0 1
        %533 = vperm.xlu0 %532, %v454
        %v534 = vpop.permute.xlu0 %533
        %536 = vset.pattern.permute.xlu0 1
        %537 = vperm.xlu0 %536, %v455
        %v538 = vpop.permute.xlu0 %537
        %v540 = vlaneseq
        %v541 = vshrl.u32 %v540, 7
        %v542 = vsub.s32 1, %v541
        %v543 = vrot.slane %v447, %v542
        %v544 = vmul.f32 %v510, %v543
        %v545 = vmul.f32 %v514, %v543
        %v546 = vmul.f32 %v518, %v543
        %v547 = vmul.f32 %v522, %v543
        %v548 = vmul.f32 %v526, %v543
        %v549 = vmul.f32 %v530, %v543
        %v550 = vmul.f32 %v534, %v543
        %v551 = vmul.f32 %v538, %v543
        %v552 = vadd.f32 %v500, %v544
        %v553 = vadd.f32 %v501, %v545
        %v554 = vadd.f32 %v502, %v546
        %v555 = vadd.f32 %v503, %v547
        %v556 = vadd.f32 %v504, %v548
        %v557 = vadd.f32 %v505, %v549
        %v558 = vadd.f32 %v506, %v550
        %v559 = vadd.f32 %v507, %v551
        %560 = vset.pattern.permute.xlu0 2
        %561 = vperm.xlu0 %560, %v448
        %v562 = vpop.permute.xlu0 %561
        %564 = vset.pattern.permute.xlu0 2
        %565 = vperm.xlu0 %564, %v449
        %v566 = vpop.permute.xlu0 %565
        %568 = vset.pattern.permute.xlu0 2
        %569 = vperm.xlu0 %568, %v450
        %v570 = vpop.permute.xlu0 %569
        %572 = vset.pattern.permute.xlu0 2
        %573 = vperm.xlu0 %572, %v451
        %v574 = vpop.permute.xlu0 %573
        %576 = vset.pattern.permute.xlu0 2
        %577 = vperm.xlu0 %576, %v452
        %v578 = vpop.permute.xlu0 %577
        %580 = vset.pattern.permute.xlu0 2
        %581 = vperm.xlu0 %580, %v453
        %v582 = vpop.permute.xlu0 %581
        %584 = vset.pattern.permute.xlu0 2
        %585 = vperm.xlu0 %584, %v454
        %v586 = vpop.permute.xlu0 %585
        %588 = vset.pattern.permute.xlu0 2
        %589 = vperm.xlu0 %588, %v455
        %v590 = vpop.permute.xlu0 %589
        %v592 = vlaneseq
        %v593 = vshrl.u32 %v592, 7
        %v594 = vsub.s32 2, %v593
        %v595 = vrot.slane %v447, %v594
        %v596 = vmul.f32 %v562, %v595
        %v597 = vmul.f32 %v566, %v595
        %v598 = vmul.f32 %v570, %v595
        %v599 = vmul.f32 %v574, %v595
        %v600 = vmul.f32 %v578, %v595
        %v601 = vmul.f32 %v582, %v595
        %v602 = vmul.f32 %v586, %v595
        %v603 = vmul.f32 %v590, %v595
        %v604 = vadd.f32 %v552, %v596
        %v605 = vadd.f32 %v553, %v597
        %v606 = vadd.f32 %v554, %v598
        %v607 = vadd.f32 %v555, %v599
        %v608 = vadd.f32 %v556, %v600
        %v609 = vadd.f32 %v557, %v601
        %v610 = vadd.f32 %v558, %v602
        %v611 = vadd.f32 %v559, %v603
        %612 = vset.pattern.permute.xlu0 3
        %613 = vperm.xlu0 %612, %v448
        %v614 = vpop.permute.xlu0 %613
        %616 = vset.pattern.permute.xlu0 3
        %617 = vperm.xlu0 %616, %v449
        %v618 = vpop.permute.xlu0 %617
        %620 = vset.pattern.permute.xlu0 3
        %621 = vperm.xlu0 %620, %v450
        %v622 = vpop.permute.xlu0 %621
        %624 = vset.pattern.permute.xlu0 3
        %625 = vperm.xlu0 %624, %v451
        %v626 = vpop.permute.xlu0 %625
        %628 = vset.pattern.permute.xlu0 3
        %629 = vperm.xlu0 %628, %v452
        %v630 = vpop.permute.xlu0 %629
        %632 = vset.pattern.permute.xlu0 3
        %633 = vperm.xlu0 %632, %v453
        %v634 = vpop.permute.xlu0 %633
        %636 = vset.pattern.permute.xlu0 3
        %637 = vperm.xlu0 %636, %v454
        %v638 = vpop.permute.xlu0 %637
        %640 = vset.pattern.permute.xlu0 3
        %641 = vperm.xlu0 %640, %v455
        %v642 = vpop.permute.xlu0 %641
        %v644 = vlaneseq
        %v645 = vshrl.u32 %v644, 7
        %v646 = vsub.s32 3, %v645
        %v647 = vrot.slane %v447, %v646
        %v648 = vmul.f32 %v614, %v647
        %v649 = vmul.f32 %v618, %v647
        %v650 = vmul.f32 %v622, %v647
        %v651 = vmul.f32 %v626, %v647
        %v652 = vmul.f32 %v630, %v647
        %v653 = vmul.f32 %v634, %v647
        %v654 = vmul.f32 %v638, %v647
        %v655 = vmul.f32 %v642, %v647
        %v656 = vadd.f32 %v604, %v648
        %v657 = vadd.f32 %v605, %v649
        %v658 = vadd.f32 %v606, %v650
        %v659 = vadd.f32 %v607, %v651
        %v660 = vadd.f32 %v608, %v652
        %v661 = vadd.f32 %v609, %v653
        %v662 = vadd.f32 %v610, %v654
        %v663 = vadd.f32 %v611, %v655
        %v664 = vld [vmem:[%s2] sm:$0xff]
        %v665 = vld [vmem:[%s2 + $0x8] sm:$0xff]
        %v666 = vld [vmem:[%s2 + $0x10] sm:$0xff]
        %v667 = vld [vmem:[%s2 + $0x18] sm:$0xff]
        %v668 = vld [vmem:[%s2 + $0x20] sm:$0xff]
        %v669 = vld [vmem:[%s2 + $0x28] sm:$0xff]
        %v670 = vld [vmem:[%s2 + $0x30] sm:$0xff]
        %v671 = vld [vmem:[%s2 + $0x38] sm:$0xff]
        %673 = vset.pattern.permute.xlu0 0
        %674 = vperm.xlu0 %673, %v664
        %v675 = vpop.permute.xlu0 %674
        %678 = vset.pattern.permute.xlu0 0
        %679 = vperm.xlu0 %678, %v665
        %v680 = vpop.permute.xlu0 %679
        %683 = vset.pattern.permute.xlu0 0
        %684 = vperm.xlu0 %683, %v666
        %v685 = vpop.permute.xlu0 %684
        %688 = vset.pattern.permute.xlu0 0
        %689 = vperm.xlu0 %688, %v667
        %v690 = vpop.permute.xlu0 %689
        %693 = vset.pattern.permute.xlu0 0
        %694 = vperm.xlu0 %693, %v668
        %v695 = vpop.permute.xlu0 %694
        %698 = vset.pattern.permute.xlu0 0
        %699 = vperm.xlu0 %698, %v669
        %v700 = vpop.permute.xlu0 %699
        %703 = vset.pattern.permute.xlu0 0
        %704 = vperm.xlu0 %703, %v670
        %v705 = vpop.permute.xlu0 %704
        %708 = vset.pattern.permute.xlu0 0
        %709 = vperm.xlu0 %708, %v671
        %v710 = vpop.permute.xlu0 %709
        %v712 = vadd.f32 %v656, %v675
        %v713 = vadd.f32 %v657, %v680
        %v714 = vadd.f32 %v658, %v685
        %v715 = vadd.f32 %v659, %v690
        %v716 = vadd.f32 %v660, %v695
        %v717 = vadd.f32 %v661, %v700
        %v718 = vadd.f32 %v662, %v705
        %v719 = vadd.f32 %v663, %v710
        %vm720 = vcmp.ge.f32.partialorder %v712, 0.0
        %vm721 = vcmp.ge.f32.partialorder %v713, 0.0
        %vm722 = vcmp.ge.f32.partialorder %v714, 0.0
        %vm723 = vcmp.ge.f32.partialorder %v715, 0.0
        %vm724 = vcmp.ge.f32.partialorder %v716, 0.0
        %vm725 = vcmp.ge.f32.partialorder %v717, 0.0
        %vm726 = vcmp.ge.f32.partialorder %v718, 0.0
        %vm727 = vcmp.ge.f32.partialorder %v719, 0.0
        %v728 = vmul.f32 %v712, 0.2
        %v729 = vmul.f32 %v713, 0.2
        %v730 = vmul.f32 %v714, 0.2
        %v731 = vmul.f32 %v715, 0.2
        %v732 = vmul.f32 %v716, 0.2
        %v733 = vmul.f32 %v717, 0.2
        %v734 = vmul.f32 %v718, 0.2
        %v735 = vmul.f32 %v719, 0.2
        %v736 = vsel %vm720, %v712, %v728
        %v737 = vsel %vm721, %v713, %v729
        %v738 = vsel %vm722, %v714, %v730
        %v739 = vsel %vm723, %v715, %v731
        %v740 = vsel %vm724, %v716, %v732
        %v741 = vsel %vm725, %v717, %v733
        %v742 = vsel %vm726, %v718, %v734
        %v743 = vsel %vm727, %v719, %v735
        %v744 = vld [vmem:[%s3] sm:$0xf]
        %v745 = vld [vmem:[%s3 + $0x4] sm:$0xf]
        %v746 = vld [vmem:[%s3 + $0x8] sm:$0xf]
        %v747 = vld [vmem:[%s3 + $0xc] sm:$0xf]
        %v748 = vld [vmem:[%s3 + $0x10] sm:$0xf]
        %v749 = vld [vmem:[%s3 + $0x14] sm:$0xf]
        %v750 = vld [vmem:[%s3 + $0x18] sm:$0xf]
        %v751 = vld [vmem:[%s3 + $0x1c] sm:$0xf]
        %v752 = vpack.c.bf16 %v737, %v736
        %v753 = vpack.c.bf16 %v739, %v738
        %v754 = vpack.c.bf16 %v741, %v740
        %v755 = vpack.c.bf16 %v743, %v742
        %v756 = vld [vmem:[%s4] sm:$0xff]
        %v757 = vld [vmem:[%s4 + $0x8] sm:$0xff]
        %v758 = vld [vmem:[%s4 + $0x10] sm:$0xff]
        %v759 = vld [vmem:[%s4 + $0x18] sm:$0xff]
        %v760 = vld [vmem:[%s4 + $0x20] sm:$0xff]
        %v761 = vld [vmem:[%s4 + $0x28] sm:$0xff]
        %v762 = vld [vmem:[%s4 + $0x30] sm:$0xff]
        %v763 = vld [vmem:[%s4 + $0x38] sm:$0xff]
        %765 = vset.pattern.permute.xlu0 0
        %766 = vperm.xlu0 %765, %v756
        %v767 = vpop.permute.xlu0 %766
        %770 = vset.pattern.permute.xlu0 0
        %771 = vperm.xlu0 %770, %v757
        %v772 = vpop.permute.xlu0 %771
        %775 = vset.pattern.permute.xlu0 0
        %776 = vperm.xlu0 %775, %v758
        %v777 = vpop.permute.xlu0 %776
        %780 = vset.pattern.permute.xlu0 0
        %781 = vperm.xlu0 %780, %v759
        %v782 = vpop.permute.xlu0 %781
        %785 = vset.pattern.permute.xlu0 0
        %786 = vperm.xlu0 %785, %v760
        %v787 = vpop.permute.xlu0 %786
        %790 = vset.pattern.permute.xlu0 0
        %791 = vperm.xlu0 %790, %v761
        %v792 = vpop.permute.xlu0 %791
        %795 = vset.pattern.permute.xlu0 0
        %796 = vperm.xlu0 %795, %v762
        %v797 = vpop.permute.xlu0 %796
        %800 = vset.pattern.permute.xlu0 0
        %801 = vperm.xlu0 %800, %v763
        %v802 = vpop.permute.xlu0 %801
        %v812 = vunpack.c.l.b16 %v744
        %v813 = vunpack.c.l.b16 %v745
        %v814 = vunpack.c.l.b16 %v746
        %v815 = vunpack.c.l.b16 %v747
        %v816 = vunpack.c.l.b16 %v748
        %v817 = vunpack.c.l.b16 %v749
        %v818 = vunpack.c.l.b16 %v750
        %v819 = vunpack.c.l.b16 %v751
        %v820 = vpack.c.b16 %v813, %v812
        %v821 = vpack.c.b16 %v815, %v814
        %v822 = vpack.c.b16 %v817, %v816
        %v823 = vpack.c.b16 %v819, %v818
        %vm824 = vcmask 523264
        %v826 = vsel %vm824, %v820, 0
        %v829 = vsel %vm824, %v821, 0
        %v832 = vsel %vm824, %v822, 0
        %v835 = vsel %vm824, %v823, 0
        %837 = vmatprep.subr.bf16.mxu0 0
        %838 = vmatpush1.bf16.msra.mxu0 %v752
        %839 = vmatprep.subr.bf16.mxu0 0
        %840 = vmatpush1.bf16.msra.mxu0 %v753
        %841 = vmatprep.subr.bf16.mxu0 0
        %842 = vmatpush1.bf16.msra.mxu0 %v754
        %843 = vmatprep.subr.bf16.mxu0 0
        %844 = vmatpush1.bf16.msra.mxu0 %v755
        %845 = vmatprep.subr.bf16.mxu0 0
        %846 = vmatpush1.bf16.msra.mxu0 0
        %847 = vmatprep.subr.bf16.mxu0 0
        %848 = vmatpush1.bf16.msra.mxu0 0
        %849 = vmatprep.subr.bf16.mxu0 0
        %850 = vmatpush1.bf16.msra.mxu0 0
        %851 = vmatprep.subr.bf16.mxu0 0
        %852 = vmatpush1.bf16.msra.mxu0 0
        %853 = vmatprep.subr.bf16.mxu0 0
        %854 = vmatpush1.bf16.msra.mxu0 0
        %855 = vmatprep.subr.bf16.mxu0 0
        %856 = vmatpush1.bf16.msra.mxu0 0
        %857 = vmatprep.subr.bf16.mxu0 0
        %858 = vmatpush1.bf16.msra.mxu0 0
        %859 = vmatprep.subr.bf16.mxu0 0
        %860 = vmatpush1.bf16.msra.mxu0 0
        %861 = vmatprep.subr.bf16.mxu0 0
        %862 = vmatpush1.bf16.msra.mxu0 0
        %863 = vmatprep.subr.bf16.mxu0 0
        %864 = vmatpush1.bf16.msra.mxu0 0
        %865 = vmatprep.subr.bf16.mxu0 0
        %866 = vmatpush1.bf16.msra.mxu0 0
        %867 = vmatprep.subr.bf16.mxu0 0
        %868 = vmatpush1.bf16.msra.mxu0 0
        %869 = vmatprep.mubr.bf16.mxu0 0
        %870 = vmatmul.mubr.bf16.gmra.mrb[0].mxu0 %v826
        %v871 = vpop.f32.mrb[0].mxu0
        %v872 = vadd.f32 %v767, %v871
        %v873 = vpop.f32.mrb[0].mxu0
        %v874 = vpop.f32.mrb[0].mxu0
        %v875 = vadd.f32 %v772, %v874
        %v876 = vpop.f32.mrb[0].mxu0
        %877 = vmatprep.mubr.bf16.mxu0 0
        %878 = vmatmul.mubr.bf16.gmra.mrb[0].mxu0 %v829
        %v879 = vpop.f32.mrb[0].mxu0
        %v880 = vadd.f32 %v777, %v879
        %v881 = vpop.f32.mrb[0].mxu0
        %v882 = vpop.f32.mrb[0].mxu0
        %v883 = vadd.f32 %v782, %v882
        %v884 = vpop.f32.mrb[0].mxu0
        %885 = vmatprep.mubr.bf16.mxu0 0
        %886 = vmatmul.mubr.bf16.gmra.mrb[0].mxu0 %v832
        %v887 = vpop.f32.mrb[0].mxu0
        %v888 = vadd.f32 %v787, %v887
        %v889 = vpop.f32.mrb[0].mxu0
        %v890 = vpop.f32.mrb[0].mxu0
        %v891 = vadd.f32 %v792, %v890
        %v892 = vpop.f32.mrb[0].mxu0
        %893 = vmatprep.mubr.bf16.mxu0 0
        %894 = vmatmul.mubr.bf16.gmra.mrb[0].mxu0 %v835
        %v895 = vpop.f32.mrb[0].mxu0
        %v896 = vadd.f32 %v797, %v895
        %v897 = vpop.f32.mrb[0].mxu0
        %v898 = vpop.f32.mrb[0].mxu0
        %v899 = vadd.f32 %v802, %v898
        %v900 = vpop.f32.mrb[0].mxu0
        %901 = vdwg.mxu0
        %vm902 = vcmp.ge.f32.partialorder %v872, 0.0
        %vm903 = vcmp.ge.f32.partialorder %v875, 0.0
        %vm904 = vcmp.ge.f32.partialorder %v880, 0.0
        %vm905 = vcmp.ge.f32.partialorder %v883, 0.0
        %vm906 = vcmp.ge.f32.partialorder %v888, 0.0
        %vm907 = vcmp.ge.f32.partialorder %v891, 0.0
        %vm908 = vcmp.ge.f32.partialorder %v896, 0.0
        %vm909 = vcmp.ge.f32.partialorder %v899, 0.0
        %v910 = vmul.f32 %v872, 0.2
        %v911 = vmul.f32 %v875, 0.2
        %v912 = vmul.f32 %v880, 0.2
        %v913 = vmul.f32 %v883, 0.2
        %v914 = vmul.f32 %v888, 0.2
        %v915 = vmul.f32 %v891, 0.2
        %v916 = vmul.f32 %v896, 0.2
        %v917 = vmul.f32 %v899, 0.2
        %v918 = vsel %vm902, %v872, %v910
        %v919 = vsel %vm903, %v875, %v911
        %v920 = vsel %vm904, %v880, %v912
        %v921 = vsel %vm905, %v883, %v913
        %v922 = vsel %vm906, %v888, %v914
        %v923 = vsel %vm907, %v891, %v915
        %v924 = vsel %vm908, %v896, %v916
        %v925 = vsel %vm909, %v899, %v917
        %v926 = vld [vmem:[%s5] sm:$0xf]
        %v927 = vld [vmem:[%s5 + $0x4] sm:$0xf]
        %v928 = vld [vmem:[%s5 + $0x8] sm:$0xf]
        %v929 = vld [vmem:[%s5 + $0xc] sm:$0xf]
        %v930 = vld [vmem:[%s5 + $0x10] sm:$0xf]
        %v931 = vld [vmem:[%s5 + $0x14] sm:$0xf]
        %v932 = vld [vmem:[%s5 + $0x18] sm:$0xf]
        %v933 = vld [vmem:[%s5 + $0x1c] sm:$0xf]
        %v934 = vpack.c.bf16 %v919, %v918
        %v935 = vpack.c.bf16 %v921, %v920
        %v936 = vpack.c.bf16 %v923, %v922
        %v937 = vpack.c.bf16 %v925, %v924
        %v938 = vld [vmem:[%s6] sm:$0xff]
        %v939 = vld [vmem:[%s6 + $0x8] sm:$0xff]
        %v940 = vld [vmem:[%s6 + $0x10] sm:$0xff]
        %v941 = vld [vmem:[%s6 + $0x18] sm:$0xff]
        %v942 = vld [vmem:[%s6 + $0x20] sm:$0xff]
        %v943 = vld [vmem:[%s6 + $0x28] sm:$0xff]
        %v944 = vld [vmem:[%s6 + $0x30] sm:$0xff]
        %v945 = vld [vmem:[%s6 + $0x38] sm:$0xff]
        %947 = vset.pattern.permute.xlu0 0
        %948 = vperm.xlu0 %947, %v938
        %v949 = vpop.permute.xlu0 %948
        %952 = vset.pattern.permute.xlu0 0
        %953 = vperm.xlu0 %952, %v939
        %v954 = vpop.permute.xlu0 %953
        %957 = vset.pattern.permute.xlu0 0
        %958 = vperm.xlu0 %957, %v940
        %v959 = vpop.permute.xlu0 %958
        %962 = vset.pattern.permute.xlu0 0
        %963 = vperm.xlu0 %962, %v941
        %v964 = vpop.permute.xlu0 %963
        %967 = vset.pattern.permute.xlu0 0
        %968 = vperm.xlu0 %967, %v942
        %v969 = vpop.permute.xlu0 %968
        %972 = vset.pattern.permute.xlu0 0
        %973 = vperm.xlu0 %972, %v943
        %v974 = vpop.permute.xlu0 %973
        %977 = vset.pattern.permute.xlu0 0
        %978 = vperm.xlu0 %977, %v944
        %v979 = vpop.permute.xlu0 %978
        %982 = vset.pattern.permute.xlu0 0
        %983 = vperm.xlu0 %982, %v945
        %v984 = vpop.permute.xlu0 %983
        %v994 = vunpack.c.l.b16 %v926
        %v995 = vunpack.c.l.b16 %v927
        %v996 = vunpack.c.l.b16 %v928
        %v997 = vunpack.c.l.b16 %v929
        %v998 = vunpack.c.l.b16 %v930
        %v999 = vunpack.c.l.b16 %v931
        %v1000 = vunpack.c.l.b16 %v932
        %v1001 = vunpack.c.l.b16 %v933
        %v1002 = vpack.c.b16 %v995, %v994
        %v1003 = vpack.c.b16 %v997, %v996
        %v1004 = vpack.c.b16 %v999, %v998
        %v1005 = vpack.c.b16 %v1001, %v1000
        %v1007 = vsel %vm824, %v1002, 0
        %v1010 = vsel %vm824, %v1003, 0
        %v1013 = vsel %vm824, %v1004, 0
        %v1016 = vsel %vm824, %v1005, 0
        %1018 = vmatprep.subr.bf16.mxu0 0
        %1019 = vmatpush1.bf16.msra.mxu0 %v934
        %1020 = vmatprep.subr.bf16.mxu0 0
        %1021 = vmatpush1.bf16.msra.mxu0 %v935
        %1022 = vmatprep.subr.bf16.mxu0 0
        %1023 = vmatpush1.bf16.msra.mxu0 %v936
        %1024 = vmatprep.subr.bf16.mxu0 0
        %1025 = vmatpush1.bf16.msra.mxu0 %v937
        %1026 = vmatprep.subr.bf16.mxu0 0
        %1027 = vmatpush1.bf16.msra.mxu0 0
        %1028 = vmatprep.subr.bf16.mxu0 0
        %1029 = vmatpush1.bf16.msra.mxu0 0
        %1030 = vmatprep.subr.bf16.mxu0 0
        %1031 = vmatpush1.bf16.msra.mxu0 0
        %1032 = vmatprep.subr.bf16.mxu0 0
        %1033 = vmatpush1.bf16.msra.mxu0 0
        %1034 = vmatprep.subr.bf16.mxu0 0
        %1035 = vmatpush1.bf16.msra.mxu0 0
        %1036 = vmatprep.subr.bf16.mxu0 0
        %1037 = vmatpush1.bf16.msra.mxu0 0
        %1038 = vmatprep.subr.bf16.mxu0 0
        %1039 = vmatpush1.bf16.msra.mxu0 0
        %1040 = vmatprep.subr.bf16.mxu0 0
        %1041 = vmatpush1.bf16.msra.mxu0 0
        %1042 = vmatprep.subr.bf16.mxu0 0
        %1043 = vmatpush1.bf16.msra.mxu0 0
        %1044 = vmatprep.subr.bf16.mxu0 0
        %1045 = vmatpush1.bf16.msra.mxu0 0
        %1046 = vmatprep.subr.bf16.mxu0 0
        %1047 = vmatpush1.bf16.msra.mxu0 0
        %1048 = vmatprep.subr.bf16.mxu0 0
        %1049 = vmatpush1.bf16.msra.mxu0 0
        %1050 = vmatprep.mubr.bf16.mxu0 0
        %1051 = vmatmul.mubr.bf16.gmra.mrb[0].mxu0 %v1007
        %v1052 = vpop.f32.mrb[0].mxu0
        %v1053 = vadd.f32 %v949, %v1052
        %v1054 = vpop.f32.mrb[0].mxu0
        %v1055 = vpop.f32.mrb[0].mxu0
        %v1056 = vadd.f32 %v954, %v1055
        %v1057 = vpop.f32.mrb[0].mxu0
        %1058 = vmatprep.mubr.bf16.mxu0 0
        %1059 = vmatmul.mubr.bf16.gmra.mrb[0].mxu0 %v1010
        %v1060 = vpop.f32.mrb[0].mxu0
        %v1061 = vadd.f32 %v959, %v1060
        %v1062 = vpop.f32.mrb[0].mxu0
        %v1063 = vpop.f32.mrb[0].mxu0
        %v1064 = vadd.f32 %v964, %v1063
        %v1065 = vpop.f32.mrb[0].mxu0
        %1066 = vmatprep.mubr.bf16.mxu0 0
        %1067 = vmatmul.mubr.bf16.gmra.mrb[0].mxu0 %v1013
        %v1068 = vpop.f32.mrb[0].mxu0
        %v1069 = vadd.f32 %v969, %v1068
        %v1070 = vpop.f32.mrb[0].mxu0
        %v1071 = vpop.f32.mrb[0].mxu0
        %v1072 = vadd.f32 %v974, %v1071
        %v1073 = vpop.f32.mrb[0].mxu0
        %1074 = vmatprep.mubr.bf16.mxu0 0
        %1075 = vmatmul.mubr.bf16.gmra.mrb[0].mxu0 %v1016
        %v1076 = vpop.f32.mrb[0].mxu0
        %v1077 = vadd.f32 %v979, %v1076
        %v1078 = vpop.f32.mrb[0].mxu0
        %v1079 = vpop.f32.mrb[0].mxu0
        %v1080 = vadd.f32 %v984, %v1079
        %v1081 = vpop.f32.mrb[0].mxu0
        %1082 = vdwg.mxu0
        %vm1083 = vcmp.ge.f32.partialorder %v1053, 0.0
        %vm1084 = vcmp.ge.f32.partialorder %v1056, 0.0
        %vm1085 = vcmp.ge.f32.partialorder %v1061, 0.0
        %vm1086 = vcmp.ge.f32.partialorder %v1064, 0.0
        %vm1087 = vcmp.ge.f32.partialorder %v1069, 0.0
        %vm1088 = vcmp.ge.f32.partialorder %v1072, 0.0
        %vm1089 = vcmp.ge.f32.partialorder %v1077, 0.0
        %vm1090 = vcmp.ge.f32.partialorder %v1080, 0.0
        %v1091 = vmul.f32 %v1053, 0.2
        %v1092 = vmul.f32 %v1056, 0.2
        %v1093 = vmul.f32 %v1061, 0.2
        %v1094 = vmul.f32 %v1064, 0.2
        %v1095 = vmul.f32 %v1069, 0.2
        %v1096 = vmul.f32 %v1072, 0.2
        %v1097 = vmul.f32 %v1077, 0.2
        %v1098 = vmul.f32 %v1080, 0.2
        %v1099 = vsel %vm1083, %v1053, %v1091
        %v1100 = vsel %vm1084, %v1056, %v1092
        %v1101 = vsel %vm1085, %v1061, %v1093
        %v1102 = vsel %vm1086, %v1064, %v1094
        %v1103 = vsel %vm1087, %v1069, %v1095
        %v1104 = vsel %vm1088, %v1072, %v1096
        %v1105 = vsel %vm1089, %v1077, %v1097
        %v1106 = vsel %vm1090, %v1080, %v1098
        %v1107 = vld [vmem:[%s7] sm:$0xf]
        %v1108 = vld [vmem:[%s7 + $0x4] sm:$0xf]
        %v1109 = vld [vmem:[%s7 + $0x8] sm:$0xf]
        %v1110 = vld [vmem:[%s7 + $0xc] sm:$0xf]
        %v1111 = vld [vmem:[%s7 + $0x10] sm:$0xf]
        %v1112 = vld [vmem:[%s7 + $0x14] sm:$0xf]
        %v1113 = vld [vmem:[%s7 + $0x18] sm:$0xf]
        %v1114 = vld [vmem:[%s7 + $0x1c] sm:$0xf]
        %v1115 = vld [vmem:[%s7 + $0x20] sm:$0xf]
        %v1116 = vld [vmem:[%s7 + $0x24] sm:$0xf]
        %v1117 = vld [vmem:[%s7 + $0x28] sm:$0xf]
        %v1118 = vld [vmem:[%s7 + $0x2c] sm:$0xf]
        %v1119 = vld [vmem:[%s7 + $0x30] sm:$0xf]
        %v1120 = vld [vmem:[%s7 + $0x34] sm:$0xf]
        %v1121 = vld [vmem:[%s7 + $0x38] sm:$0xf]
        %v1122 = vld [vmem:[%s7 + $0x3c] sm:$0xf]
        %v1123 = vpack.c.bf16 %v1100, %v1099
        %v1124 = vpack.c.bf16 %v1102, %v1101
        %v1125 = vpack.c.bf16 %v1104, %v1103
        %v1126 = vpack.c.bf16 %v1106, %v1105
        %v1127 = vld [vmem:[%s8] sm:$0xff]
        %v1128 = vld [vmem:[%s8 + $0x8] sm:$0xff]
        %v1129 = vld [vmem:[%s8 + $0x10] sm:$0xff]
        %v1130 = vld [vmem:[%s8 + $0x18] sm:$0xff]
        %v1131 = vld [vmem:[%s8 + $0x20] sm:$0xff]
        %v1132 = vld [vmem:[%s8 + $0x28] sm:$0xff]
        %v1133 = vld [vmem:[%s8 + $0x30] sm:$0xff]
        %v1134 = vld [vmem:[%s8 + $0x38] sm:$0xff]
        %v1135 = vld [vmem:[%s8 + $0x40] sm:$0xff]
        %v1136 = vld [vmem:[%s8 + $0x48] sm:$0xff]
        %v1137 = vld [vmem:[%s8 + $0x50] sm:$0xff]
        %v1138 = vld [vmem:[%s8 + $0x58] sm:$0xff]
        %v1139 = vld [vmem:[%s8 + $0x60] sm:$0xff]
        %v1140 = vld [vmem:[%s8 + $0x68] sm:$0xff]
        %v1141 = vld [vmem:[%s8 + $0x70] sm:$0xff]
        %v1142 = vld [vmem:[%s8 + $0x78] sm:$0xff]
        %1144 = vset.pattern.permute.xlu0 0
        %1145 = vperm.xlu0 %1144, %v1127
        %v1146 = vpop.permute.xlu0 %1145
        %1149 = vset.pattern.permute.xlu0 0
        %1150 = vperm.xlu0 %1149, %v1128
        %v1151 = vpop.permute.xlu0 %1150
        %1154 = vset.pattern.permute.xlu0 0
        %1155 = vperm.xlu0 %1154, %v1129
        %v1156 = vpop.permute.xlu0 %1155
        %1159 = vset.pattern.permute.xlu0 0
        %1160 = vperm.xlu0 %1159, %v1130
        %v1161 = vpop.permute.xlu0 %1160
        %1164 = vset.pattern.permute.xlu0 0
        %1165 = vperm.xlu0 %1164, %v1131
        %v1166 = vpop.permute.xlu0 %1165
        %1169 = vset.pattern.permute.xlu0 0
        %1170 = vperm.xlu0 %1169, %v1132
        %v1171 = vpop.permute.xlu0 %1170
        %1174 = vset.pattern.permute.xlu0 0
        %1175 = vperm.xlu0 %1174, %v1133
        %v1176 = vpop.permute.xlu0 %1175
        %1179 = vset.pattern.permute.xlu0 0
        %1180 = vperm.xlu0 %1179, %v1134
        %v1181 = vpop.permute.xlu0 %1180
        %1184 = vset.pattern.permute.xlu0 0
        %1185 = vperm.xlu0 %1184, %v1135
        %v1186 = vpop.permute.xlu0 %1185
        %1189 = vset.pattern.permute.xlu0 0
        %1190 = vperm.xlu0 %1189, %v1136
        %v1191 = vpop.permute.xlu0 %1190
        %1194 = vset.pattern.permute.xlu0 0
        %1195 = vperm.xlu0 %1194, %v1137
        %v1196 = vpop.permute.xlu0 %1195
        %1199 = vset.pattern.permute.xlu0 0
        %1200 = vperm.xlu0 %1199, %v1138
        %v1201 = vpop.permute.xlu0 %1200
        %1204 = vset.pattern.permute.xlu0 0
        %1205 = vperm.xlu0 %1204, %v1139
        %v1206 = vpop.permute.xlu0 %1205
        %1209 = vset.pattern.permute.xlu0 0
        %1210 = vperm.xlu0 %1209, %v1140
        %v1211 = vpop.permute.xlu0 %1210
        %1214 = vset.pattern.permute.xlu0 0
        %1215 = vperm.xlu0 %1214, %v1141
        %v1216 = vpop.permute.xlu0 %1215
        %1219 = vset.pattern.permute.xlu0 0
        %1220 = vperm.xlu0 %1219, %v1142
        %v1221 = vpop.permute.xlu0 %1220
        %v1239 = vunpack.c.l.b16 %v1107
        %v1240 = vunpack.c.l.b16 %v1108
        %v1241 = vunpack.c.l.b16 %v1109
        %v1242 = vunpack.c.l.b16 %v1110
        %v1243 = vunpack.c.l.b16 %v1111
        %v1244 = vunpack.c.l.b16 %v1112
        %v1245 = vunpack.c.l.b16 %v1113
        %v1246 = vunpack.c.l.b16 %v1114
        %v1247 = vunpack.c.l.b16 %v1115
        %v1248 = vunpack.c.l.b16 %v1116
        %v1249 = vunpack.c.l.b16 %v1117
        %v1250 = vunpack.c.l.b16 %v1118
        %v1251 = vunpack.c.l.b16 %v1119
        %v1252 = vunpack.c.l.b16 %v1120
        %v1253 = vunpack.c.l.b16 %v1121
        %v1254 = vunpack.c.l.b16 %v1122
        %v1255 = vpack.c.b16 %v1240, %v1239
        %v1256 = vpack.c.b16 %v1242, %v1241
        %v1257 = vpack.c.b16 %v1244, %v1243
        %v1258 = vpack.c.b16 %v1246, %v1245
        %v1259 = vpack.c.b16 %v1248, %v1247
        %v1260 = vpack.c.b16 %v1250, %v1249
        %v1261 = vpack.c.b16 %v1252, %v1251
        %v1262 = vpack.c.b16 %v1254, %v1253
        %v1264 = vsel %vm824, %v1255, 0
        %v1267 = vsel %vm824, %v1256, 0
        %v1270 = vsel %vm824, %v1257, 0
        %v1273 = vsel %vm824, %v1258, 0
        %v1276 = vsel %vm824, %v1259, 0
        %v1279 = vsel %vm824, %v1260, 0
        %v1282 = vsel %vm824, %v1261, 0
        %v1285 = vsel %vm824, %v1262, 0
        %1287 = vmatprep.subr.bf16.mxu0 0
        %1288 = vmatpush1.bf16.msra.mxu0 %v1123
        %1289 = vmatprep.subr.bf16.mxu0 0
        %1290 = vmatpush1.bf16.msra.mxu0 %v1124
        %1291 = vmatprep.subr.bf16.mxu0 0
        %1292 = vmatpush1.bf16.msra.mxu0 %v1125
        %1293 = vmatprep.subr.bf16.mxu0 0
        %1294 = vmatpush1.bf16.msra.mxu0 %v1126
        %1295 = vmatprep.subr.bf16.mxu0 0
        %1296 = vmatpush1.bf16.msra.mxu0 0
        %1297 = vmatprep.subr.bf16.mxu0 0
        %1298 = vmatpush1.bf16.msra.mxu0 0
        %1299 = vmatprep.subr.bf16.mxu0 0
        %1300 = vmatpush1.bf16.msra.mxu0 0
        %1301 = vmatprep.subr.bf16.mxu0 0
        %1302 = vmatpush1.bf16.msra.mxu0 0
        %1303 = vmatprep.subr.bf16.mxu0 0
        %1304 = vmatpush1.bf16.msra.mxu0 0
        %1305 = vmatprep.subr.bf16.mxu0 0
        %1306 = vmatpush1.bf16.msra.mxu0 0
        %1307 = vmatprep.subr.bf16.mxu0 0
        %1308 = vmatpush1.bf16.msra.mxu0 0
        %1309 = vmatprep.subr.bf16.mxu0 0
        %1310 = vmatpush1.bf16.msra.mxu0 0
        %1311 = vmatprep.subr.bf16.mxu0 0
        %1312 = vmatpush1.bf16.msra.mxu0 0
        %1313 = vmatprep.subr.bf16.mxu0 0
        %1314 = vmatpush1.bf16.msra.mxu0 0
        %1315 = vmatprep.subr.bf16.mxu0 0
        %1316 = vmatpush1.bf16.msra.mxu0 0
        %1317 = vmatprep.subr.bf16.mxu0 0
        %1318 = vmatpush1.bf16.msra.mxu0 0
        %1319 = vmatprep.mubr.bf16.mxu0 0
        %1320 = vmatmul.mubr.bf16.gmra.mrb[0].mxu0 %v1264
        %v1321 = vpop.f32.mrb[0].mxu0
        %v1322 = vadd.f32 %v1146, %v1321
        %v1323 = vpop.f32.mrb[0].mxu0
        %v1324 = vpop.f32.mrb[0].mxu0
        %v1325 = vadd.f32 %v1151, %v1324
        %v1326 = vpop.f32.mrb[0].mxu0
        %1327 = vmatprep.mubr.bf16.mxu0 0
        %1328 = vmatmul.mubr.bf16.gmra.mrb[0].mxu0 %v1267
        %v1329 = vpop.f32.mrb[0].mxu0
        %v1330 = vadd.f32 %v1156, %v1329
        %v1331 = vpop.f32.mrb[0].mxu0
        %v1332 = vpop.f32.mrb[0].mxu0
        %v1333 = vadd.f32 %v1161, %v1332
        %v1334 = vpop.f32.mrb[0].mxu0
        %1335 = vmatprep.mubr.bf16.mxu0 0
        %1336 = vmatmul.mubr.bf16.gmra.mrb[0].mxu0 %v1270
        %v1337 = vpop.f32.mrb[0].mxu0
        %v1338 = vadd.f32 %v1166, %v1337
        %v1339 = vpop.f32.mrb[0].mxu0
        %v1340 = vpop.f32.mrb[0].mxu0
        %v1341 = vadd.f32 %v1171, %v1340
        %v1342 = vpop.f32.mrb[0].mxu0
        %1343 = vmatprep.mubr.bf16.mxu0 0
        %1344 = vmatmul.mubr.bf16.gmra.mrb[0].mxu0 %v1273
        %v1345 = vpop.f32.mrb[0].mxu0
        %v1346 = vadd.f32 %v1176, %v1345
        %v1347 = vpop.f32.mrb[0].mxu0
        %v1348 = vpop.f32.mrb[0].mxu0
        %v1349 = vadd.f32 %v1181, %v1348
        %v1350 = vpop.f32.mrb[0].mxu0
        %1351 = vmatprep.mubr.bf16.mxu0 0
        %1352 = vmatmul.mubr.bf16.gmra.mrb[0].mxu0 %v1276
        %v1353 = vpop.f32.mrb[0].mxu0
        %v1354 = vadd.f32 %v1186, %v1353
        %v1355 = vpop.f32.mrb[0].mxu0
        %v1356 = vpop.f32.mrb[0].mxu0
        %v1357 = vadd.f32 %v1191, %v1356
        %v1358 = vpop.f32.mrb[0].mxu0
        %1359 = vmatprep.mubr.bf16.mxu0 0
        %1360 = vmatmul.mubr.bf16.gmra.mrb[0].mxu0 %v1279
        %v1361 = vpop.f32.mrb[0].mxu0
        %v1362 = vadd.f32 %v1196, %v1361
        %v1363 = vpop.f32.mrb[0].mxu0
        %v1364 = vpop.f32.mrb[0].mxu0
        %v1365 = vadd.f32 %v1201, %v1364
        %v1366 = vpop.f32.mrb[0].mxu0
        %1367 = vmatprep.mubr.bf16.mxu0 0
        %1368 = vmatmul.mubr.bf16.gmra.mrb[0].mxu0 %v1282
        %v1369 = vpop.f32.mrb[0].mxu0
        %v1370 = vadd.f32 %v1206, %v1369
        %v1371 = vpop.f32.mrb[0].mxu0
        %v1372 = vpop.f32.mrb[0].mxu0
        %v1373 = vadd.f32 %v1211, %v1372
        %v1374 = vpop.f32.mrb[0].mxu0
        %1375 = vmatprep.mubr.bf16.mxu0 0
        %1376 = vmatmul.mubr.bf16.gmra.mrb[0].mxu0 %v1285
        %v1377 = vpop.f32.mrb[0].mxu0
        %v1378 = vadd.f32 %v1216, %v1377
        %v1379 = vpop.f32.mrb[0].mxu0
        %v1380 = vpop.f32.mrb[0].mxu0
        %v1381 = vadd.f32 %v1221, %v1380
        %v1382 = vpop.f32.mrb[0].mxu0
        %1383 = vdwg.mxu0
        %vm1384 = vcmp.ge.f32.partialorder %v1322, 0.0
        %vm1385 = vcmp.ge.f32.partialorder %v1325, 0.0
        %vm1386 = vcmp.ge.f32.partialorder %v1330, 0.0
        %vm1387 = vcmp.ge.f32.partialorder %v1333, 0.0
        %vm1388 = vcmp.ge.f32.partialorder %v1338, 0.0
        %vm1389 = vcmp.ge.f32.partialorder %v1341, 0.0
        %vm1390 = vcmp.ge.f32.partialorder %v1346, 0.0
        %vm1391 = vcmp.ge.f32.partialorder %v1349, 0.0
        %vm1392 = vcmp.ge.f32.partialorder %v1354, 0.0
        %vm1393 = vcmp.ge.f32.partialorder %v1357, 0.0
        %vm1394 = vcmp.ge.f32.partialorder %v1362, 0.0
        %vm1395 = vcmp.ge.f32.partialorder %v1365, 0.0
        %vm1396 = vcmp.ge.f32.partialorder %v1370, 0.0
        %vm1397 = vcmp.ge.f32.partialorder %v1373, 0.0
        %vm1398 = vcmp.ge.f32.partialorder %v1378, 0.0
        %vm1399 = vcmp.ge.f32.partialorder %v1381, 0.0
        %v1400 = vmul.f32 %v1322, 0.2
        %v1401 = vmul.f32 %v1325, 0.2
        %v1402 = vmul.f32 %v1330, 0.2
        %v1403 = vmul.f32 %v1333, 0.2
        %v1404 = vmul.f32 %v1338, 0.2
        %v1405 = vmul.f32 %v1341, 0.2
        %v1406 = vmul.f32 %v1346, 0.2
        %v1407 = vmul.f32 %v1349, 0.2
        %v1408 = vmul.f32 %v1354, 0.2
        %v1409 = vmul.f32 %v1357, 0.2
        %v1410 = vmul.f32 %v1362, 0.2
        %v1411 = vmul.f32 %v1365, 0.2
        %v1412 = vmul.f32 %v1370, 0.2
        %v1413 = vmul.f32 %v1373, 0.2
        %v1414 = vmul.f32 %v1378, 0.2
        %v1415 = vmul.f32 %v1381, 0.2
        %v1416 = vsel %vm1384, %v1322, %v1400
        %v1417 = vsel %vm1385, %v1325, %v1401
        %v1418 = vsel %vm1386, %v1330, %v1402
        %v1419 = vsel %vm1387, %v1333, %v1403
        %v1420 = vsel %vm1388, %v1338, %v1404
        %v1421 = vsel %vm1389, %v1341, %v1405
        %v1422 = vsel %vm1390, %v1346, %v1406
        %v1423 = vsel %vm1391, %v1349, %v1407
        %v1424 = vsel %vm1392, %v1354, %v1408
        %v1425 = vsel %vm1393, %v1357, %v1409
        %v1426 = vsel %vm1394, %v1362, %v1410
        %v1427 = vsel %vm1395, %v1365, %v1411
        %v1428 = vsel %vm1396, %v1370, %v1412
        %v1429 = vsel %vm1397, %v1373, %v1413
        %v1430 = vsel %vm1398, %v1378, %v1414
        %v1431 = vsel %vm1399, %v1381, %v1415
        %vm1432 = vcmask 130048
        %v1433 = vsel %vm1432, %v1416, -inf
        %v1434 = vsel %vm1432, %v1417, -inf
        %v1435 = vsel %vm1432, %v1418, -inf
        %v1436 = vsel %vm1432, %v1419, -inf
        %v1437 = vsel %vm1432, %v1420, -inf
        %v1438 = vmax.f32 %v1433, %v1437
        %v1439 = vsel %vm1432, %v1421, -inf
        %v1440 = vmax.f32 %v1434, %v1439
        %v1441 = vsel %vm1432, %v1422, -inf
        %v1442 = vmax.f32 %v1435, %v1441
        %v1443 = vsel %vm1432, %v1423, -inf
        %v1444 = vmax.f32 %v1436, %v1443
        %v1445 = vsel %vm1432, %v1424, -inf
        %v1446 = vmax.f32 %v1438, %v1445
        %v1447 = vsel %vm1432, %v1425, -inf
        %v1448 = vmax.f32 %v1440, %v1447
        %v1449 = vsel %vm1432, %v1426, -inf
        %v1450 = vmax.f32 %v1442, %v1449
        %v1451 = vsel %vm1432, %v1427, -inf
        %v1452 = vmax.f32 %v1444, %v1451
        %v1453 = vsel %vm1432, %v1428, -inf
        %v1454 = vmax.f32 %v1446, %v1453
        %v1455 = vsel %vm1432, %v1429, -inf
        %v1456 = vmax.f32 %v1448, %v1455
        %v1457 = vsel %vm1432, %v1430, -inf
        %v1458 = vmax.f32 %v1450, %v1457
        %v1459 = vsel %vm1432, %v1431, -inf
        %v1460 = vmax.f32 %v1452, %v1459
        %v1461 = vmax.f32 %v1454, %v1456
        %v1462 = vmax.f32 %v1458, %v1460
        %v1463 = vmax.f32 %v1461, %v1462
        %v1464 = vrot.slane %v1463, 4
        %v1465 = vmax.f32 %v1463, %v1464
        %v1466 = vrot.slane %v1465, 2
        %v1467 = vmax.f32 %v1465, %v1466
        %v1468 = vrot.slane %v1467, 1
        %v1469 = vmax.f32 %v1467, %v1468
        %v1470 = vld [vmem:[%s9] sm:$0xff]
        %1472 = vset.pattern.permute.xlu0 0
        %1473 = vperm.xlu0 %1472, %v1470
        %v1474 = vpop.permute.xlu0 %1473
        %v1476 = vmul.f32 %v1469, %v1474
        %v1477 = vld [vmem:[%s10] sm:$0xff]
        %1479 = vset.pattern.permute.xlu0 0
        %1480 = vperm.xlu0 %1479, %v1477
        %v1481 = vpop.permute.xlu0 %1480
        %v1483 = vadd.f32 %v1476, %v1481
        %1484 = vst.msk [vmem:[%s432] sm:$0xff] %vm1432, %v1483
        %v1485 = vsel %vm1432, %v1483, -inf
        %v1486 = vrot.slane %v1485, 4
        %v1487 = vmax.f32 %v1485, %v1486
        %v1488 = vrot.slane %v1487, 2
        %v1489 = vmax.f32 %v1487, %v1488
        %v1490 = vrot.slane %v1489, 1
        %v1491 = vmax.f32 %v1489, %v1490
        %v1492 = vsub.f32 %v1483, %v1491
        %v1493 = vmul.f32 %v1492, 1.442695
        %v1494 = vpow.pop %v1493
        %v1495 = vsel %vm1432, %v1494, 0.0
        %v1496 = vrot.slane %v1495, 4
        %v1497 = vadd.f32 %v1495, %v1496
        %v1498 = vrot.slane %v1497, 2
        %v1499 = vadd.f32 %v1497, %v1498
        %v1500 = vrot.slane %v1499, 1
        %v1501 = vadd.f32 %v1499, %v1500
        %v1502 = vlog2.pop %v1501
        %v1503 = vmul.f32 %v1502, 0.6931472
        %v1504 = vadd.f32 %v1491, %v1503
        %v1505 = vadd.f32 %v1504, 1.0
        %v1506 = vrcp.pop %v1505
        %v1507 = vmul.f32 %v1504, %v1506
        %vm1508 = vcmask 122880
        %1509 = vst.msk [vmem:[%s438] sm:$0x1] %vm1508, %v1507
        %s1510 = sand.u32 %s290, 1
        %s1511 = scalar_lea.sflag [#allocation3], %s1510
        %s1512 = sand.u32 %s290, 1
        %s1513 = smul.addr %s1512, 8
        %s1514 = scalar_lea.vmem [#allocation2], %s1513
        %s1515 = sand.u32 %s318, 1
        %s1516 = scalar_lea.sflag [#allocation5], %s1515
        %s1517 = sand.u32 %s318, 1
        %s1518 = scalar_lea.vmem [#allocation4], %s1517
        // Predicated region
        $region65: #{stack_disc_net.1} parent=63 // pred_check
          %p1519 = pneg %p300
        $region66: #{stack_disc_net.1} parent=63 // pred_check_branch
          %1521 = sbr.rel (%p1519) target = $region68
        $region67: #{stack_disc_net.1} parent=63 // pred_region
          %s1523 = ssub.s32 128, 128
          %1524 = vsyncadd %s1511, %s1523
          %s1525 = sadd.s32 %s35, %s34
          %s1526 = smul.addr %s1525, 128
          %s1527 = scalar_lea.hbm %s11, %s1526
          %s1529 = sshll.u32 %s1514, 4
          %s1530 = int_to_ptr.vmem [resolvable:$true] %s1529
          %1532 = dma.vmem_to_hbm [thread:$0]  %s1530, 128, %s1527, %s1511
        $region68: #{stack_disc_net.1} parent=63 // pred_fallthru
          _
        // Predicated region
        $region69: #{stack_disc_net.1} parent=63 // pred_check
          %p1533 = pneg %p328
        $region70: #{stack_disc_net.1} parent=63 // pred_check_branch
          %1535 = sbr.rel (%p1533) target = $region72
        $region71: #{stack_disc_net.1} parent=63 // pred_region
          %s1537 = ssub.s32 16, 16
          %1538 = vsyncadd %s1516, %s1537
          %s1539 = sadd.s32 %s35, %s34
          %s1540 = smul.addr %s1539, 16
          %s1541 = scalar_lea.hbm %s12, %s1540
          %s1543 = sshll.u32 %s1518, 4
          %s1544 = int_to_ptr.vmem [resolvable:$true] %s1543
          %1546 = dma.vmem_to_hbm [thread:$0]  %s1544, 16, %s1541, %s1516
        $region72: #{stack_disc_net.1} parent=63 // pred_fallthru
          _
      $region64: #{stack_disc_net.1} parent=5 // pred_fallthru
        _
      %p1547 = scmp.le.s32.totalorder 2, %s25
      // Predicated region
      $region73: #{stack_disc_net.1} parent=5 // pred_check
        %p1548 = pneg %p1547
      $region74: #{stack_disc_net.1} parent=5 // pred_check_branch
        %1550 = sbr.rel (%p1548) target = $region76
      $region75: #{stack_disc_net.1} parent=5 // pred_region
        %s1551 = ssub.s32 %s25, 2
        // Predicated region
        $region77: #{stack_disc_net.1} parent=75 // pred_check
          %p1552 = pneg %p306
        $region78: #{stack_disc_net.1} parent=75 // pred_check_branch
          %1554 = sbr.rel (%p1552) target = $region80
        $region79: #{stack_disc_net.1} parent=75 // pred_region
          %s1555 = sand.u32 %s291, 1
          %s1556 = scalar_lea.sflag [#allocation3], %s1555
          %s1557 = sand.u32 %s291, 1
          %s1558 = smul.addr %s1557, 8
          %s1559 = scalar_lea.vmem [#allocation2], %s1558
          %1560 = dma.done %s1556, 128
        $region80: #{stack_disc_net.1} parent=75 // pred_fallthru
          _
        // Predicated region
        $region81: #{stack_disc_net.1} parent=75 // pred_check
          %p1561 = pneg %p334
        $region82: #{stack_disc_net.1} parent=75 // pred_check_branch
          %1563 = sbr.rel (%p1561) target = $region84
        $region83: #{stack_disc_net.1} parent=75 // pred_region
          %s1564 = sand.u32 %s319, 1
          %s1565 = scalar_lea.sflag [#allocation5], %s1564
          %s1566 = sand.u32 %s319, 1
          %s1567 = scalar_lea.vmem [#allocation4], %s1566
          %1568 = dma.done %s1565, 16
        $region84: #{stack_disc_net.1} parent=75 // pred_fallthru
          _
      $region76: #{stack_disc_net.1} parent=5 // pred_fallthru
        _
    $region6: #{stack_disc_net.1} parent=1 // loop_footer
      %s29 = sadd.s32 1, %s25
    $region7: #{stack_disc_net.1} parent=1 // loop_footer_branch
      %24 = sbr.rel target = $region3
    $region8: #{stack_disc_net.1} parent=1 // loop_exit
      _
    %1569 = vsyncpa [#allocation3], 1
    %s1570 = scalar_lea.sflag [#allocation3], 1
    %1571 = vsyncpa %s1570, 1
    %1572 = vsyncpa [#allocation5], 1
    %s1573 = scalar_lea.sflag [#allocation5], 1
    %1574 = vsyncpa %s1573, 1

</llo_original>
